<compile_context>
chip_gen: v5e
topology: v5e:2x2
jax: 0.10.0
libtpu: 0.0.40
codegen_flags: <defaults>
</compile_context>

<pallas_src>
import functools

import jax
import jax.numpy as jnp
from jax.experimental import pallas as pl
from jax.experimental.pallas import tpu as pltpu


# ----------------------------- Pallas kernels ------------------------------

def _enc_clause_kernel(xc_ref, a_ref, xv_ref, wc_ref, wvc_ref, bc_ref,
                       hc_ref, agg_ref):
    """hc_blk = relu(xc_blk @ Wc + (A_blk @ xv) @ Wvc + bc), K-tiled over Nv."""
    k = pl.program_id(1)

    @pl.when(k == 0)
    def _init():
        agg_ref[...] = jnp.zeros_like(agg_ref)

    # 0/1 adjacency arrives as bf16 (half the HBM bytes); upcast is exact.
    a_blk = a_ref[...].astype(jnp.float32)                       # (Tr, Tk)
    agg_ref[...] += jnp.dot(a_blk, xv_ref[...],
                            preferred_element_type=jnp.float32)  # (Tr, Dv)

    @pl.when(k == pl.num_programs(1) - 1)
    def _finalize():
        h = (jnp.dot(xc_ref[...], wc_ref[...], preferred_element_type=jnp.float32)
             + jnp.dot(agg_ref[...], wvc_ref[...], preferred_element_type=jnp.float32)
             + bc_ref[...])
        hc_ref[...] = jnp.maximum(h, 0.0)


def _fused_var_dec_kernel(xv_ref, a_ref, xchc_ref, wv_ref, wenc_ref, bv_ref,
                          wo1_ref, wdec_ref, bo_ref, hv_ref, out_ref, agg_ref):
    """Variable-node encoder fused with the decoder.

    Per K-step (over clauses): one MXU dot aggregates A.T @ [xc ‖ hc] using the
    A column-block already in VMEM.  At the last K-step:
        hv  = relu(xv @ Wv + agg @ [Wcv; 0] + bv)
        out = sigmoid(hv @ Wo1 + agg @ [0; Wo2] + bo)
    """
    k = pl.program_id(1)

    @pl.when(k == 0)
    def _init():
        agg_ref[...] = jnp.zeros_like(agg_ref)

    # A column-block (Tk, Tr): upcast (exact) + in-register transpose instead of
    # materializing a.T in HBM.
    a_t = a_ref[...].astype(jnp.float32).T                        # (Tr, Tk)
    agg_ref[...] += jnp.dot(a_t, xchc_ref[...],
                            preferred_element_type=jnp.float32)   # (Tr, Dc+H)

    @pl.when(k == pl.num_programs(1) - 1)
    def _finalize():
        agg = agg_ref[...]
        hv = (jnp.dot(xv_ref[...], wv_ref[...], preferred_element_type=jnp.float32)
              + jnp.dot(agg, wenc_ref[...], preferred_element_type=jnp.float32)
              + bv_ref[...])
        hv = jnp.maximum(hv, 0.0)
        hv_ref[...] = hv
        z = (jnp.dot(hv, wo1_ref[...], preferred_element_type=jnp.float32)
             + jnp.dot(agg, wdec_ref[...], preferred_element_type=jnp.float32)
             + bo_ref[...])
        out_ref[...] = jax.nn.sigmoid(z)


# ----------------------------- wrapper --------------------------------------

def _round_up(x, m):
    return ((x + m - 1) // m) * m


def _default_row_tile():
    """128 rows for v5e (4x128 MXU); 256 rows for v6e / v7x (2x256 MXU)."""
    try:
        kind = jax.devices()[0].device_kind.lower()
    except Exception:
        return 128
    if "v6" in kind or "v7" in kind:
        return 256
    return 128


@functools.partial(jax.jit, static_argnums=(4, 5))
def _forward_impl(xv, xc, a, params, tile_rows, k_tile):
    Nv, Dv = xv.shape
    Nc, Dc = xc.shape
    H = params["wv"].shape[1]
    Dout = params["wo1"].shape[1]

    # k_tile is a multiple of tile_rows, so padding to k_tile satisfies both the
    # row-tiling and the reduction-tiling of each node dimension.
    Nvp = _round_up(Nv, k_tile)
    Ncp = _round_up(Nc, k_tile)

    xv_p = jnp.pad(xv, ((0, Nvp - Nv), (0, 0)))
    xc_p = jnp.pad(xc, ((0, Ncp - Nc), (0, 0)))
    # 0/1 adjacency is exact in bf16 -> halves HBM traffic of the dominant operand.
    a_bf = jnp.pad(a.astype(jnp.bfloat16), ((0, Ncp - Nc), (0, Nvp - Nv)))

    cp = pltpu.CompilerParams(
        dimension_semantics=("parallel", "arbitrary"),
        vmem_limit_bytes=48 * 1024 * 1024,
    )

    # ---- clause encoder: hc = relu(xc @ Wc + (A @ xv) @ Wvc + bc) ----
    hc_p = pl.pallas_call(
        _enc_clause_kernel,
        out_shape=jax.ShapeDtypeStruct((Ncp, H), jnp.float32),
        grid_spec=pltpu.PrefetchScalarGridSpec(
            num_scalar_prefetch=0,
            grid=(Ncp // tile_rows, Nvp // k_tile),
            in_specs=[
                pl.BlockSpec((tile_rows, Dc), lambda i, k: (i, 0)),      # xc rows
                pl.BlockSpec((tile_rows, k_tile), lambda i, k: (i, k)),  # A row blk (bf16)
                pl.BlockSpec((k_tile, Dv), lambda i, k: (k, 0)),         # xv k-slice
                pl.BlockSpec((Dc, H), lambda i, k: (0, 0)),              # Wc
                pl.BlockSpec((Dv, H), lambda i, k: (0, 0)),              # Wvc
                pl.BlockSpec((1, H), lambda i, k: (0, 0)),               # bc
            ],
            out_specs=pl.BlockSpec((tile_rows, H), lambda i, k: (i, 0)),
            scratch_shapes=[pltpu.VMEM((tile_rows, Dv), jnp.float32)],
        ),
        compiler_params=cp,
        cost_estimate=pl.CostEstimate(
            flops=2 * Ncp * Nvp * Dv + 2 * Ncp * (Dc + Dv) * H,
            transcendentals=0,
            bytes_accessed=Ncp * Nvp * 2 + (Ncp * Dc + Nvp * Dv + Ncp * H) * 4,
        ),
    )(xc_p, a_bf, xv_p, params["wc"], params["wvc"], params["bc"])

    # Stack xc‖hc once in the wrapper + zero-pad the weight stacks so the fused
    # kernel needs a single aggregation GEMM per K-step (K = Dc+H instead of 2x Dc/H).
    xchc_p = jnp.concatenate([xc_p, hc_p], axis=-1)                      # (Ncp, Dc+H)
    wenc = jnp.concatenate(
        [params["wcv"], jnp.zeros((H, H), jnp.float32)], axis=0)         # (Dc+H, H)
    wdec = jnp.concatenate(
        [jnp.zeros((Dc, Dout), jnp.float32), params["wo2"]], axis=0)     # (Dc+H, Dout)

    # ---- fused variable encoder + decoder ----
    hv_p, out_p = pl.pallas_call(
        _fused_var_dec_kernel,
        out_shape=(jax.ShapeDtypeStruct((Nvp, H), jnp.float32),
                   jax.ShapeDtypeStruct((Nvp, Dout), jnp.float32)),
        grid_spec=pltpu.PrefetchScalarGridSpec(
            num_scalar_prefetch=0,
            grid=(Nvp // tile_rows, Ncp // k_tile),
            in_specs=[
                pl.BlockSpec((tile_rows, Dv), lambda i, k: (i, 0)),       # xv rows
                pl.BlockSpec((k_tile, tile_rows), lambda i, k: (k, i)),   # A col blk (bf16)
                pl.BlockSpec((k_tile, Dc + H), lambda i, k: (k, 0)),      # xc‖hc k-slice
                pl.BlockSpec((Dv, H), lambda i, k: (0, 0)),               # Wv
                pl.BlockSpec((Dc + H, H), lambda i, k: (0, 0)),           # [Wcv; 0]
                pl.BlockSpec((1, H), lambda i, k: (0, 0)),                # bv
                pl.BlockSpec((H, Dout), lambda i, k: (0, 0)),             # Wo1
                pl.BlockSpec((Dc + H, Dout), lambda i, k: (0, 0)),        # [0; Wo2]
                pl.BlockSpec((1, Dout), lambda i, k: (0, 0)),             # bo
            ],
            out_specs=[pl.BlockSpec((tile_rows, H), lambda i, k: (i, 0)),
                       pl.BlockSpec((tile_rows, Dout), lambda i, k: (i, 0))],
            scratch_shapes=[pltpu.VMEM((tile_rows, Dc + H), jnp.float32)],
        ),
        compiler_params=cp,
        cost_estimate=pl.CostEstimate(
            flops=(2 * Nvp * Ncp * (Dc + H)
                   + 2 * Nvp * (Dv + Dc + H) * H
                   + 2 * Nvp * (H + Dc + H) * Dout),
            transcendentals=Nvp * Dout,
            bytes_accessed=(Ncp * Nvp * 2
                            + (Nvp * Dv + Ncp * (Dc + H) + Nvp * H + Nvp * Dout) * 4),
        ),
    )(xv_p, a_bf, xchc_p, params["wv"], wenc, params["bv"],
      params["wo1"], wdec, params["bo"])

    return out_p[:Nv], hv_p[:Nv], hc_p[:Nc]


def graph_transformer_forward(xv, xc, a, params, *, tile_rows=None, k_tile=None):
    """Forward pass of the instantiated GraphTransformer.

    xv: [Nv, Dv] variable-node features
    xc: [Nc, Dc] clause-node features
    a : [Nc, Nv] dense bipartite adjacency (0/1, float32)
    """
    Nv = xv.shape[0]
    Nc = xc.shape[0]
    if tile_rows is None:
        pref = _default_row_tile()
        # keep >=2 row tiles when the graph allows it (v7x: two TensorCores).
        tile_rows = min(pref, max(128, _round_up(pl.cdiv(max(Nv, 2), 2), 128)))
    tile_rows = _round_up(max(int(tile_rows), 128), 128)
    if k_tile is None:
        k_tile = min(2048, _round_up(max(Nv, Nc, 128), 128))
    k_tile = _round_up(max(int(k_tile), tile_rows), tile_rows)
    return _forward_impl(xv, xc, a, params, int(tile_rows), int(k_tile))


def _reference_forward(xv, xc, a, params):
    at = a.T
    hv = jax.nn.relu(xv @ params["wv"] + (at @ xc) @ params["wcv"] + params["bv"])
    hc = jax.nn.relu(xc @ params["wc"] + (a @ xv) @ params["wvc"] + params["bc"])
    out = jax.nn.sigmoid(hv @ params["wo1"] + (at @ hc) @ params["wo2"] + params["bo"])
    return out, hv, hc


# ----------------------------- main -----------------------------------------

if __name__ == "__main__":
    # Deliberately non-tile-multiple node counts to exercise padding + slicing.
    Nv, Nc = 200, 180          # variable / clause node counts
    Dv, Dc = 32, 32            # input feature dims
    H = 32                     # hidden dim
    Dout = 8                   # decoder output dim

    key = jax.random.PRNGKey(0)
    keys = jax.random.split(key, 12)

    xv = jax.random.normal(keys[0], (Nv, Dv), jnp.float32)
    xc = jax.random.normal(keys[1], (Nc, Dc), jnp.float32)
    a = (jax.random.uniform(keys[2], (Nc, Nv)) < 0.1).astype(jnp.float32)

    def init(k, shape, fan_in):
        return jax.random.normal(k, shape, jnp.float32) * (1.0 / jnp.sqrt(fan_in))

    params = {
        "wv":  init(keys[3], (Dv, H), Dv),
        "wcv": init(keys[4], (Dc, H), Dc),
        "bv":  0.1 * jax.random.normal(keys[9], (1, H), jnp.float32),
        "wc":  init(keys[5], (Dc, H), Dc),
        "wvc": init(keys[6], (Dv, H), Dv),
        "bc":  0.1 * jax.random.normal(keys[10], (1, H), jnp.float32),
        "wo1": init(keys[7], (H, Dout), H),
        "wo2": init(keys[8], (H, Dout), H),
        "bo":  0.1 * jax.random.normal(keys[11], (1, Dout), jnp.float32),
    }

    # Small tiles here so the demo exercises multi-row AND multi-K accumulation
    # (grids become (2, 2)); production calls can rely on the per-generation defaults.
    out, hv, hc = graph_transformer_forward(xv, xc, a, params,
                                            tile_rows=128, k_tile=128)
    jax.block_until_ready((out, hv, hc))

    ref_out, ref_hv, ref_hc = _reference_forward(xv, xc, a, params)
    assert jnp.allclose(hc, ref_hc, atol=1e-4, rtol=1e-4)
    assert jnp.allclose(hv, ref_hv, atol=1e-4, rtol=1e-4)
    assert jnp.allclose(out, ref_out, atol=1e-4, rtol=1e-4)

    # TODO(synk): the PyTorch module's encoder/decoder are abstract (injected); this
    # instantiates the standard bipartite message-passing encoder/decoder pair.
    print("KERNEL_OK")
</pallas_src>

<mosaic_0001>
module attributes {stable_mosaic.version = 11 : i64} {
  func.func @_fused_var_dec_kernel(%arg0: i32, %arg1: i32, %arg2: memref<128x32xf32, #tpu.memory_space<vmem>>, %arg3: memref<128x128xbf16, #tpu.memory_space<vmem>>, %arg4: memref<128x64xf32, #tpu.memory_space<vmem>>, %arg5: memref<32x32xf32, #tpu.memory_space<vmem>>, %arg6: memref<64x32xf32, #tpu.memory_space<vmem>>, %arg7: memref<1x32xf32, #tpu.memory_space<vmem>>, %arg8: memref<32x8xf32, #tpu.memory_space<vmem>>, %arg9: memref<64x8xf32, #tpu.memory_space<vmem>>, %arg10: memref<1x8xf32, #tpu.memory_space<vmem>>, %arg11: memref<128x32xf32, #tpu.memory_space<vmem>>, %arg12: memref<128x8xf32, #tpu.memory_space<vmem>>, %arg13: memref<128x64xf32, #tpu.memory_space<vmem>>) attributes {dimension_semantics = [#tpu.dimension_semantics<parallel>, #tpu.dimension_semantics<arbitrary>], iteration_bounds = array<i64: 2, 2>, scalar_prefetch = 0 : i64, scratch_operands = 1 : i64, tpu.core_type = #tpu.core_type<tc>, window_params = [{transform_indices = @transform_0, window_bounds = array<i64: 128, 32>}, {transform_indices = @transform_1, window_bounds = array<i64: 128, 128>}, {transform_indices = @transform_2, window_bounds = array<i64: 128, 64>}, {pipeline_mode = #tpu.pipeline_mode<synchronous>, transform_indices = @transform_3, window_bounds = array<i64: 32, 32>}, {pipeline_mode = #tpu.pipeline_mode<synchronous>, transform_indices = @transform_4, window_bounds = array<i64: 64, 32>}, {pipeline_mode = #tpu.pipeline_mode<synchronous>, transform_indices = @transform_5, window_bounds = array<i64: 1, 32>}, {pipeline_mode = #tpu.pipeline_mode<synchronous>, transform_indices = @transform_6, window_bounds = array<i64: 32, 8>}, {pipeline_mode = #tpu.pipeline_mode<synchronous>, transform_indices = @transform_7, window_bounds = array<i64: 64, 8>}, {pipeline_mode = #tpu.pipeline_mode<synchronous>, transform_indices = @transform_8, window_bounds = array<i64: 1, 8>}, {transform_indices = @transform_9, window_bounds = array<i64: 128, 32>}, {transform_indices = @transform_10, window_bounds = array<i64: 128, 8>}]} {
    %c0_i32 = arith.constant 0 : i32
    %0 = arith.cmpi eq, %arg1, %c0_i32 : i32
    %1 = arith.extui %0 : i1 to i32
    %c0_i32_0 = arith.constant 0 : i32
    %2 = arith.cmpi ne, %1, %c0_i32_0 : i32
    scf.if %2 {
      %cst_9 = arith.constant 0.000000e+00 : f32
      %14 = vector.broadcast %cst_9 : f32 to vector<128x64xf32>
      %c0_10 = arith.constant 0 : index
      %c0_11 = arith.constant 0 : index
      %15 = vector.load %arg13[%c0_10, %c0_11] : memref<128x64xf32, #tpu.memory_space<vmem>>, vector<128x64xf32>
      tpu.vector_store %arg13[%c0_10, %c0_11], %14 {strides = array<i32>} : memref<128x64xf32, #tpu.memory_space<vmem>>, vector<128x64xf32>,
    } else {
    }
    %c0 = arith.constant 0 : index
    %c0_1 = arith.constant 0 : index
    %3 = vector.load %arg3[%c0, %c0_1] : memref<128x128xbf16, #tpu.memory_space<vmem>>, vector<128x128xbf16>
    %4 = arith.extf %3 : vector<128x128xbf16> to vector<128x128xf32>
    %5 = tpu.transpose %4, [1, 0] : vector<128x128xf32> -> vector<128x128xf32>
    %c0_2 = arith.constant 0 : index
    %c0_3 = arith.constant 0 : index
    %6 = vector.load %arg13[%c0_2, %c0_3] : memref<128x64xf32, #tpu.memory_space<vmem>>, vector<128x64xf32>
    %c0_4 = arith.constant 0 : index
    %c0_5 = arith.constant 0 : index
    %7 = vector.load %arg4[%c0_4, %c0_5] : memref<128x64xf32, #tpu.memory_space<vmem>>, vector<128x64xf32>
    %cst = arith.constant dense<0.000000e+00> : vector<128x64xf32>
    %8 = tpu.matmul %5, %7, %cst {dimension_numbers = #tpu.dot_dimension_numbers<[1], [0], [0], [1], [0, 0, 1, 1], [], []>} : vector<128x128xf32>, vector<128x64xf32>, vector<128x64xf32> -> vector<128x64xf32>
    %9 = arith.addf %6, %8 : vector<128x64xf32>
    %c0_6 = arith.constant 0 : index
    %c0_7 = arith.constant 0 : index
    %10 = vector.load %arg13[%c0_6, %c0_7] : memref<128x64xf32, #tpu.memory_space<vmem>>, vector<128x64xf32>
    tpu.vector_store %arg13[%c0_6, %c0_7], %9 {strides = array<i32>} : memref<128x64xf32, #tpu.memory_space<vmem>>, vector<128x64xf32>,
    %c1_i32 = arith.constant 1 : i32
    %11 = arith.cmpi eq, %arg1, %c1_i32 : i32
    %12 = arith.extui %11 : i1 to i32
    %c0_i32_8 = arith.constant 0 : i32
    %13 = arith.cmpi ne, %12, %c0_i32_8 : i32
    scf.if %13 {
      %c0_9 = arith.constant 0 : index
      %c0_10 = arith.constant 0 : index
      %14 = vector.load %arg13[%c0_9, %c0_10] : memref<128x64xf32, #tpu.memory_space<vmem>>, vector<128x64xf32>
      %c0_11 = arith.constant 0 : index
      %c0_12 = arith.constant 0 : index
      %15 = vector.load %arg2[%c0_11, %c0_12] : memref<128x32xf32, #tpu.memory_space<vmem>>, vector<128x32xf32>
      %c0_13 = arith.constant 0 : index
      %c0_14 = arith.constant 0 : index
      %16 = vector.load %arg5[%c0_13, %c0_14] : memref<32x32xf32, #tpu.memory_space<vmem>>, vector<32x32xf32>
      %cst_15 = arith.constant dense<0.000000e+00> : vector<128x32xf32>
      %17 = tpu.matmul %15, %16, %cst_15 {dimension_numbers = #tpu.dot_dimension_numbers<[1], [0], [0], [1], [0, 0, 1, 1], [], []>} : vector<128x32xf32>, vector<32x32xf32>, vector<128x32xf32> -> vector<128x32xf32>
      %c0_16 = arith.constant 0 : index
      %c0_17 = arith.constant 0 : index
      %18 = vector.load %arg6[%c0_16, %c0_17] : memref<64x32xf32, #tpu.memory_space<vmem>>, vector<64x32xf32>
      %cst_18 = arith.constant dense<0.000000e+00> : vector<128x32xf32>
      %19 = tpu.matmul %14, %18, %cst_18 {dimension_numbers = #tpu.dot_dimension_numbers<[1], [0], [0], [1], [0, 0, 1, 1], [], []>} : vector<128x64xf32>, vector<64x32xf32>, vector<128x32xf32> -> vector<128x32xf32>
      %20 = arith.addf %17, %19 : vector<128x32xf32>
      %c0_19 = arith.constant 0 : index
      %c0_20 = arith.constant 0 : index
      %21 = vector.load %arg7[%c0_19, %c0_20] : memref<1x32xf32, #tpu.memory_space<vmem>>, vector<1x32xf32>
      %22 = vector.broadcast %21 : vector<1x32xf32> to vector<128x32xf32>
      %23 = arith.addf %20, %22 : vector<128x32xf32>
      %cst_21 = arith.constant 0.000000e+00 : f32
      %24 = vector.broadcast %cst_21 : f32 to vector<128x32xf32>
      %25 = arith.maximumf %23, %24 : vector<128x32xf32>
      %c0_22 = arith.constant 0 : index
      %c0_23 = arith.constant 0 : index
      %26 = vector.load %arg11[%c0_22, %c0_23] : memref<128x32xf32, #tpu.memory_space<vmem>>, vector<128x32xf32>
      tpu.vector_store %arg11[%c0_22, %c0_23], %25 {strides = array<i32>} : memref<128x32xf32, #tpu.memory_space<vmem>>, vector<128x32xf32>,
      %c0_24 = arith.constant 0 : index
      %c0_25 = arith.constant 0 : index
      %27 = vector.load %arg8[%c0_24, %c0_25] : memref<32x8xf32, #tpu.memory_space<vmem>>, vector<32x8xf32>
      %cst_26 = arith.constant dense<0.000000e+00> : vector<128x8xf32>
      %28 = tpu.matmul %25, %27, %cst_26 {dimension_numbers = #tpu.dot_dimension_numbers<[1], [0], [0], [1], [0, 0, 1, 1], [], []>} : vector<128x32xf32>, vector<32x8xf32>, vector<128x8xf32> -> vector<128x8xf32>
      %c0_27 = arith.constant 0 : index
      %c0_28 = arith.constant 0 : index
      %29 = vector.load %arg9[%c0_27, %c0_28] : memref<64x8xf32, #tpu.memory_space<vmem>>, vector<64x8xf32>
      %cst_29 = arith.constant dense<0.000000e+00> : vector<128x8xf32>
      %30 = tpu.matmul %14, %29, %cst_29 {dimension_numbers = #tpu.dot_dimension_numbers<[1], [0], [0], [1], [0, 0, 1, 1], [], []>} : vector<128x64xf32>, vector<64x8xf32>, vector<128x8xf32> -> vector<128x8xf32>
      %31 = arith.addf %28, %30 : vector<128x8xf32>
      %c0_30 = arith.constant 0 : index
      %c0_31 = arith.constant 0 : index
      %32 = vector.load %arg10[%c0_30, %c0_31] : memref<1x8xf32, #tpu.memory_space<vmem>>, vector<1x8xf32>
      %33 = vector.broadcast %32 : vector<1x8xf32> to vector<128x8xf32>
      %34 = arith.addf %31, %33 : vector<128x8xf32>
      %35 = arith.negf %34 : vector<128x8xf32>
      %36 = math.exp %35 : vector<128x8xf32>
      %cst_32 = arith.constant 1.000000e+00 : f32
      %37 = vector.broadcast %cst_32 : f32 to vector<128x8xf32>
      %38 = arith.addf %37, %36 : vector<128x8xf32>
      %39 = arith.divf %37, %38 : vector<128x8xf32>
      %c0_33 = arith.constant 0 : index
      %c0_34 = arith.constant 0 : index
      %40 = vector.load %arg12[%c0_33, %c0_34] : memref<128x8xf32, #tpu.memory_space<vmem>>, vector<128x8xf32>
      tpu.vector_store %arg12[%c0_33, %c0_34], %39 {strides = array<i32>} : memref<128x8xf32, #tpu.memory_space<vmem>>, vector<128x8xf32>,
    } else {
    }
    return
  }
  func.func @transform_0(%arg0: i32, %arg1: i32) -> (i32, i32) {
    %c0_i32 = arith.constant 0 : i32
    %c0_i32_0 = arith.constant 0 : i32
    return %arg0, %c0_i32 : i32, i32
  }
  func.func @transform_1(%arg0: i32, %arg1: i32) -> (i32, i32) {
    %c0_i32 = arith.constant 0 : i32
    return %arg1, %arg0 : i32, i32
  }
  func.func @transform_2(%arg0: i32, %arg1: i32) -> (i32, i32) {
    %c0_i32 = arith.constant 0 : i32
    %c0_i32_0 = arith.constant 0 : i32
    return %arg1, %c0_i32 : i32, i32
  }
  func.func @transform_3(%arg0: i32, %arg1: i32) -> (i32, i32) {
    %c0_i32 = arith.constant 0 : i32
    %c0_i32_0 = arith.constant 0 : i32
    %c0_i32_1 = arith.constant 0 : i32
    return %c0_i32, %c0_i32_0 : i32, i32
  }
  func.func @transform_4(%arg0: i32, %arg1: i32) -> (i32, i32) {
    %c0_i32 = arith.constant 0 : i32
    %c0_i32_0 = arith.constant 0 : i32
    %c0_i32_1 = arith.constant 0 : i32
    return %c0_i32, %c0_i32_0 : i32, i32
  }
  func.func @transform_5(%arg0: i32, %arg1: i32) -> (i32, i32) {
    %c0_i32 = arith.constant 0 : i32
    %c0_i32_0 = arith.constant 0 : i32
    %c0_i32_1 = arith.constant 0 : i32
    return %c0_i32, %c0_i32_0 : i32, i32
  }
  func.func @transform_6(%arg0: i32, %arg1: i32) -> (i32, i32) {
    %c0_i32 = arith.constant 0 : i32
    %c0_i32_0 = arith.constant 0 : i32
    %c0_i32_1 = arith.constant 0 : i32
    return %c0_i32, %c0_i32_0 : i32, i32
  }
  func.func @transform_7(%arg0: i32, %arg1: i32) -> (i32, i32) {
    %c0_i32 = arith.constant 0 : i32
    %c0_i32_0 = arith.constant 0 : i32
    %c0_i32_1 = arith.constant 0 : i32
    return %c0_i32, %c0_i32_0 : i32, i32
  }
  func.func @transform_8(%arg0: i32, %arg1: i32) -> (i32, i32) {
    %c0_i32 = arith.constant 0 : i32
    %c0_i32_0 = arith.constant 0 : i32
    %c0_i32_1 = arith.constant 0 : i32
    return %c0_i32, %c0_i32_0 : i32, i32
  }
  func.func @transform_9(%arg0: i32, %arg1: i32) -> (i32, i32) {
    %c0_i32 = arith.constant 0 : i32
    %c0_i32_0 = arith.constant 0 : i32
    return %arg0, %c0_i32 : i32, i32
  }
  func.func @transform_10(%arg0: i32, %arg1: i32) -> (i32, i32) {
    %c0_i32 = arith.constant 0 : i32
    %c0_i32_0 = arith.constant 0 : i32
    return %arg0, %c0_i32 : i32, i32
  }
}

module attributes {stable_mosaic.version = 11 : i64} {
  func.func @_enc_clause_kernel(%arg0: i32, %arg1: i32, %arg2: memref<128x32xf32, #tpu.memory_space<vmem>>, %arg3: memref<128x128xbf16, #tpu.memory_space<vmem>>, %arg4: memref<128x32xf32, #tpu.memory_space<vmem>>, %arg5: memref<32x32xf32, #tpu.memory_space<vmem>>, %arg6: memref<32x32xf32, #tpu.memory_space<vmem>>, %arg7: memref<1x32xf32, #tpu.memory_space<vmem>>, %arg8: memref<128x32xf32, #tpu.memory_space<vmem>>, %arg9: memref<128x32xf32, #tpu.memory_space<vmem>>) attributes {dimension_semantics = [#tpu.dimension_semantics<parallel>, #tpu.dimension_semantics<arbitrary>], iteration_bounds = array<i64: 2, 2>, scalar_prefetch = 0 : i64, scratch_operands = 1 : i64, tpu.core_type = #tpu.core_type<tc>, window_params = [{transform_indices = @transform_0, window_bounds = array<i64: 128, 32>}, {transform_indices = @transform_1, window_bounds = array<i64: 128, 128>}, {transform_indices = @transform_2, window_bounds = array<i64: 128, 32>}, {pipeline_mode = #tpu.pipeline_mode<synchronous>, transform_indices = @transform_3, window_bounds = array<i64: 32, 32>}, {pipeline_mode = #tpu.pipeline_mode<synchronous>, transform_indices = @transform_4, window_bounds = array<i64: 32, 32>}, {pipeline_mode = #tpu.pipeline_mode<synchronous>, transform_indices = @transform_5, window_bounds = array<i64: 1, 32>}, {transform_indices = @transform_6, window_bounds = array<i64: 128, 32>}]} {
    %c0_i32 = arith.constant 0 : i32
    %0 = arith.cmpi eq, %arg1, %c0_i32 : i32
    %1 = arith.extui %0 : i1 to i32
    %c0_i32_0 = arith.constant 0 : i32
    %2 = arith.cmpi ne, %1, %c0_i32_0 : i32
    scf.if %2 {
      %cst_9 = arith.constant 0.000000e+00 : f32
      %13 = vector.broadcast %cst_9 : f32 to vector<128x32xf32>
      %c0_10 = arith.constant 0 : index
      %c0_11 = arith.constant 0 : index
      %14 = vector.load %arg9[%c0_10, %c0_11] : memref<128x32xf32, #tpu.memory_space<vmem>>, vector<128x32xf32>
      tpu.vector_store %arg9[%c0_10, %c0_11], %13 {strides = array<i32>} : memref<128x32xf32, #tpu.memory_space<vmem>>, vector<128x32xf32>,
    } else {
    }
    %c0 = arith.constant 0 : index
    %c0_1 = arith.constant 0 : index
    %3 = vector.load %arg3[%c0, %c0_1] : memref<128x128xbf16, #tpu.memory_space<vmem>>, vector<128x128xbf16>
    %4 = arith.extf %3 : vector<128x128xbf16> to vector<128x128xf32>
    %c0_2 = arith.constant 0 : index
    %c0_3 = arith.constant 0 : index
    %5 = vector.load %arg9[%c0_2, %c0_3] : memref<128x32xf32, #tpu.memory_space<vmem>>, vector<128x32xf32>
    %c0_4 = arith.constant 0 : index
    %c0_5 = arith.constant 0 : index
    %6 = vector.load %arg4[%c0_4, %c0_5] : memref<128x32xf32, #tpu.memory_space<vmem>>, vector<128x32xf32>
    %cst = arith.constant dense<0.000000e+00> : vector<128x32xf32>
    %7 = tpu.matmul %4, %6, %cst {dimension_numbers = #tpu.dot_dimension_numbers<[1], [0], [0], [1], [0, 0, 1, 1], [], []>} : vector<128x128xf32>, vector<128x32xf32>, vector<128x32xf32> -> vector<128x32xf32>
    %8 = arith.addf %5, %7 : vector<128x32xf32>
    %c0_6 = arith.constant 0 : index
    %c0_7 = arith.constant 0 : index
    %9 = vector.load %arg9[%c0_6, %c0_7] : memref<128x32xf32, #tpu.memory_space<vmem>>, vector<128x32xf32>
    tpu.vector_store %arg9[%c0_6, %c0_7], %8 {strides = array<i32>} : memref<128x32xf32, #tpu.memory_space<vmem>>, vector<128x32xf32>,
    %c1_i32 = arith.constant 1 : i32
    %10 = arith.cmpi eq, %arg1, %c1_i32 : i32
    %11 = arith.extui %10 : i1 to i32
    %c0_i32_8 = arith.constant 0 : i32
    %12 = arith.cmpi ne, %11, %c0_i32_8 : i32
    scf.if %12 {
      %c0_9 = arith.constant 0 : index
      %c0_10 = arith.constant 0 : index
      %13 = vector.load %arg2[%c0_9, %c0_10] : memref<128x32xf32, #tpu.memory_space<vmem>>, vector<128x32xf32>
      %c0_11 = arith.constant 0 : index
      %c0_12 = arith.constant 0 : index
      %14 = vector.load %arg5[%c0_11, %c0_12] : memref<32x32xf32, #tpu.memory_space<vmem>>, vector<32x32xf32>
      %cst_13 = arith.constant dense<0.000000e+00> : vector<128x32xf32>
      %15 = tpu.matmul %13, %14, %cst_13 {dimension_numbers = #tpu.dot_dimension_numbers<[1], [0], [0], [1], [0, 0, 1, 1], [], []>} : vector<128x32xf32>, vector<32x32xf32>, vector<128x32xf32> -> vector<128x32xf32>
      %c0_14 = arith.constant 0 : index
      %c0_15 = arith.constant 0 : index
      %16 = vector.load %arg9[%c0_14, %c0_15] : memref<128x32xf32, #tpu.memory_space<vmem>>, vector<128x32xf32>
      %c0_16 = arith.constant 0 : index
      %c0_17 = arith.constant 0 : index
      %17 = vector.load %arg6[%c0_16, %c0_17] : memref<32x32xf32, #tpu.memory_space<vmem>>, vector<32x32xf32>
      %cst_18 = arith.constant dense<0.000000e+00> : vector<128x32xf32>
      %18 = tpu.matmul %16, %17, %cst_18 {dimension_numbers = #tpu.dot_dimension_numbers<[1], [0], [0], [1], [0, 0, 1, 1], [], []>} : vector<128x32xf32>, vector<32x32xf32>, vector<128x32xf32> -> vector<128x32xf32>
      %19 = arith.addf %15, %18 : vector<128x32xf32>
      %c0_19 = arith.constant 0 : index
      %c0_20 = arith.constant 0 : index
      %20 = vector.load %arg7[%c0_19, %c0_20] : memref<1x32xf32, #tpu.memory_space<vmem>>, vector<1x32xf32>
      %21 = vector.broadcast %20 : vector<1x32xf32> to vector<128x32xf32>
      %22 = arith.addf %19, %21 : vector<128x32xf32>
      %cst_21 = arith.constant 0.000000e+00 : f32
      %23 = vector.broadcast %cst_21 : f32 to vector<128x32xf32>
      %24 = arith.maximumf %22, %23 : vector<128x32xf32>
      %c0_22 = arith.constant 0 : index
      %c0_23 = arith.constant 0 : index
      %25 = vector.load %arg8[%c0_22, %c0_23] : memref<128x32xf32, #tpu.memory_space<vmem>>, vector<128x32xf32>
      tpu.vector_store %arg8[%c0_22, %c0_23], %24 {strides = array<i32>} : memref<128x32xf32, #tpu.memory_space<vmem>>, vector<128x32xf32>,
    } else {
    }
    return
  }
  func.func @transform_0(%arg0: i32, %arg1: i32) -> (i32, i32) {
    %c0_i32 = arith.constant 0 : i32
    %c0_i32_0 = arith.constant 0 : i32
    return %arg0, %c0_i32 : i32, i32
  }
  func.func @transform_1(%arg0: i32, %arg1: i32) -> (i32, i32) {
    %c0_i32 = arith.constant 0 : i32
    return %arg0, %arg1 : i32, i32
  }
  func.func @transform_2(%arg0: i32, %arg1: i32) -> (i32, i32) {
    %c0_i32 = arith.constant 0 : i32
    %c0_i32_0 = arith.constant 0 : i32
    return %arg1, %c0_i32 : i32, i32
  }
  func.func @transform_3(%arg0: i32, %arg1: i32) -> (i32, i32) {
    %c0_i32 = arith.constant 0 : i32
    %c0_i32_0 = arith.constant 0 : i32
    %c0_i32_1 = arith.constant 0 : i32
    return %c0_i32, %c0_i32_0 : i32, i32
  }
  func.func @transform_4(%arg0: i32, %arg1: i32) -> (i32, i32) {
    %c0_i32 = arith.constant 0 : i32
    %c0_i32_0 = arith.constant 0 : i32
    %c0_i32_1 = arith.constant 0 : i32
    return %c0_i32, %c0_i32_0 : i32, i32
  }
  func.func @transform_5(%arg0: i32, %arg1: i32) -> (i32, i32) {
    %c0_i32 = arith.constant 0 : i32
    %c0_i32_0 = arith.constant 0 : i32
    %c0_i32_1 = arith.constant 0 : i32
    return %c0_i32, %c0_i32_0 : i32, i32
  }
  func.func @transform_6(%arg0: i32, %arg1: i32) -> (i32, i32) {
    %c0_i32 = arith.constant 0 : i32
    %c0_i32_0 = arith.constant 0 : i32
    return %arg0, %c0_i32 : i32, i32
  }
}

</mosaic_0001>

<llo_original>
// kernel: _forward_impl.3
$region0: #{_forward_impl.3}
  #allocation0 [shape = 'u32[]', space=smem, size = 0x4, offset = 0x4, fixed_abs, tag = 'smem constant byte address 0x4 - core index']
  #allocation1 [shape = 'u32[72,128]{1,0:T(1,128)}', space=vmem, size = 0x9000, scoped, tag = 'internal scratch']
  #allocation2 [shape = 'f32[128,64]{1,0:T(8,128)}', space=vmem, size = 0x10000, scoped, tag = 'scratch operand']
  %s0 = inlined_call_operand.vmem [shape: f32[256,32], index: 0, kind: input, shape index: {}]
  %s1 = inlined_call_operand.vmem [shape: bf16[256,256], index: 1, kind: input, shape index: {}]
  %s2 = inlined_call_operand.vmem [shape: f32[256,64], index: 2, kind: input, shape index: {}]
  %s3 = inlined_call_operand.vmem [shape: f32[32,32], index: 3, kind: input, shape index: {}]
  %s4 = inlined_call_operand.vmem [shape: f32[64,32], index: 4, kind: input, shape index: {}]
  %s5 = inlined_call_operand.vmem [shape: f32[1,32], index: 5, kind: input, shape index: {}]
  %s6 = inlined_call_operand.vmem [shape: f32[32,8], index: 6, kind: input, shape index: {}]
  %s7 = inlined_call_operand.vmem [shape: f32[64,8], index: 7, kind: input, shape index: {}]
  %s8 = inlined_call_operand.vmem [shape: f32[1,8], index: 8, kind: input, shape index: {}]
  %s9 = inlined_call_operand.vmem [shape: f32[256,32], index: 9, kind: output, shape index: {0}]
  %s10 = inlined_call_operand.vmem [shape: f32[256,8], index: 10, kind: output, shape index: {1}]
  %11 = xla_tuple %s9, %s10
  %s12 = sld [smem:[#allocation0]]
  $region126: #{_forward_impl.3} parent=0
    _
  %s14 = ssub.s32 1, %s12
  %s15 = scalar_select 0, %s14, %s12
  $region1: #{_forward_impl.3} parent=0
    #allocation3 [shape = 'u8[65536]{0}', space=vmem, size = 0x10000, scoped, tag = 'input window, operand 1']
    loop: start=0, step=1, limit=6
    $region2: #{_forward_impl.3} parent=1 // loop_pre_header
      _
    $region3: #{_forward_impl.3} parent=1 // loop_header
      %s17 = sphi 0, %s21
      %p18 = scmp.ge.s32.totalorder %s17, 6
      %s24 = sphi 0, %s36
      %s25 = sphi 0, %s32
      %s26 = sphi 0, %s24
      %s27 = sphi 0, %s25
      %s28 = sphi 0, %s26
      %s29 = sphi 0, %s27
      %s39 = sphi 0, %s41
      %s42 = sphi 0, %s39
      %s43 = sphi 0, %s42
      %s59 = sphi 0, %s43
      %s67 = sphi 0, %s69
      %s70 = sphi 0, %s67
      %s71 = sphi 0, %s70
      %s87 = sphi 0, %s71
      %s93 = sphi 0, %s95
      %s96 = sphi 0, %s93
      %s97 = sphi 0, %s96
      %s113 = sphi 0, %s97
      %s117 = sphi 0, %s117
      %s119 = sphi 0, %s117
      %s120 = sphi 0, %s119
      %s134 = sphi 0, %s120
      %s138 = sphi 0, %s138
      %s140 = sphi 0, %s138
      %s141 = sphi 0, %s140
      %s155 = sphi 0, %s141
      %s159 = sphi 0, %s159
      %s161 = sphi 0, %s159
      %s162 = sphi 0, %s161
      %s176 = sphi 0, %s162
      %s180 = sphi 0, %s180
      %s182 = sphi 0, %s180
      %s183 = sphi 0, %s182
      %s197 = sphi 0, %s183
      %s201 = sphi 0, %s201
      %s203 = sphi 0, %s201
      %s204 = sphi 0, %s203
      %s218 = sphi 0, %s204
      %s222 = sphi 0, %s222
      %s224 = sphi 0, %s222
      %s225 = sphi 0, %s224
      %s239 = sphi 0, %s225
      %s245 = sphi 0, %s247
      %s248 = sphi 0, %s245
      %s249 = sphi 0, %s248
      %s265 = sphi 0, %s249
      %s271 = sphi 0, %s273
      %s274 = sphi 0, %s271
      %s275 = sphi 0, %s274
      %s291 = sphi 0, %s275
    $region4: #{_forward_impl.3} parent=1 // loop_header_branch
      %20 = sbr.rel (%p18) target = $region8
    $region5: #{_forward_impl.3} parent=1 // loop_body
      %s22 = ssub.s32 %s17, 1
      %s23 = ssub.s32 %s17, 2
      %s30 = sadd.s32 1, %s25
      %p31 = scmp.ge.s32.totalorder %s30, 2
      %s32 = scalar_select %p31, 0, %s30
      %s33 = sadd.s32 1, %s24
      %s34 = scalar_select %p31, %s33, %s24
      %p35 = scmp.ge.s32.totalorder %s34, 2
      %s36 = scalar_select %p35, 0, %s34
      %s37 = ssub.s32 %s24, %s36
      %p38 = scmp.eq.s32.totalorder %s37, 0
      %s40 = sadd.s32 %s39, 1
      %s41 = scalar_select %p38, %s39, %s40
      %p44 = pneg %p38
      %p45 = scmp.eq.s32.totalorder %s17, 3
      %p46 = por %p44, %p45
      %p47 = scmp.ne.s32.totalorder %s39, %s42
      %p48 = scmp.eq.s32.totalorder %s17, 0
      %p49 = por %p47, %p48
      %p50 = scmp.ne.s32.totalorder %s39, %s42
      %p51 = scmp.eq.s32.totalorder %s22, 3
      %p52 = por %p50, %p51
      %p53 = scmp.ne.s32.totalorder %s42, %s43
      %p54 = scmp.eq.s32.totalorder %s22, 0
      %p55 = por %p53, %p54
      %p56 = scmp.ne.s32.totalorder %s42, %s43
      %p57 = scmp.eq.s32.totalorder %s23, 3
      %p58 = por %p56, %p57
      %p60 = scmp.ne.s32.totalorder %s43, %s59
      %p61 = scmp.eq.s32.totalorder %s23, 0
      %p62 = por %p60, %p61
      %s63 = ssub.s32 %s25, %s32
      %s64 = ssub.s32 %s24, %s36
      %s65 = sor.u32 %s63, %s64
      %p66 = scmp.eq.s32.totalorder %s65, 0
      %s68 = sadd.s32 %s67, 1
      %s69 = scalar_select %p66, %s67, %s68
      %p72 = pneg %p66
      %p73 = scmp.eq.s32.totalorder %s17, 3
      %p74 = por %p72, %p73
      %p75 = scmp.ne.s32.totalorder %s67, %s70
      %p76 = scmp.eq.s32.totalorder %s17, 0
      %p77 = por %p75, %p76
      %p78 = scmp.ne.s32.totalorder %s67, %s70
      %p79 = scmp.eq.s32.totalorder %s22, 3
      %p80 = por %p78, %p79
      %p81 = scmp.ne.s32.totalorder %s70, %s71
      %p82 = scmp.eq.s32.totalorder %s22, 0
      %p83 = por %p81, %p82
      %p84 = scmp.ne.s32.totalorder %s70, %s71
      %p85 = scmp.eq.s32.totalorder %s23, 3
      %p86 = por %p84, %p85
      %p88 = scmp.ne.s32.totalorder %s71, %s87
      %p89 = scmp.eq.s32.totalorder %s23, 0
      %p90 = por %p88, %p89
      %s91 = ssub.s32 %s25, %s32
      %p92 = scmp.eq.s32.totalorder %s91, 0
      %s94 = sadd.s32 %s93, 1
      %s95 = scalar_select %p92, %s93, %s94
      %p98 = pneg %p92
      %p99 = scmp.eq.s32.totalorder %s17, 3
      %p100 = por %p98, %p99
      %p101 = scmp.ne.s32.totalorder %s93, %s96
      %p102 = scmp.eq.s32.totalorder %s17, 0
      %p103 = por %p101, %p102
      %p104 = scmp.ne.s32.totalorder %s93, %s96
      %p105 = scmp.eq.s32.totalorder %s22, 3
      %p106 = por %p104, %p105
      %p107 = scmp.ne.s32.totalorder %s96, %s97
      %p108 = scmp.eq.s32.totalorder %s22, 0
      %p109 = por %p107, %p108
      %p110 = scmp.ne.s32.totalorder %s96, %s97
      %p111 = scmp.eq.s32.totalorder %s23, 3
      %p112 = por %p110, %p111
      %p114 = scmp.ne.s32.totalorder %s97, %s113
      %p115 = scmp.eq.s32.totalorder %s23, 0
      %p116 = por %p114, %p115
      %s118 = sadd.s32 %s117, 1
      %p121 = scmp.eq.s32.totalorder %s17, 3
      %p122 = scmp.ne.s32.totalorder %s117, %s119
      %p123 = scmp.eq.s32.totalorder %s17, 0
      %p124 = por %p122, %p123
      %p125 = scmp.ne.s32.totalorder %s117, %s119
      %p126 = scmp.eq.s32.totalorder %s22, 3
      %p127 = por %p125, %p126
      %p128 = scmp.ne.s32.totalorder %s119, %s120
      %p129 = scmp.eq.s32.totalorder %s22, 0
      %p130 = por %p128, %p129
      %p131 = scmp.ne.s32.totalorder %s119, %s120
      %p132 = scmp.eq.s32.totalorder %s23, 3
      %p133 = por %p131, %p132
      %p135 = scmp.ne.s32.totalorder %s120, %s134
      %p136 = scmp.eq.s32.totalorder %s23, 0
      %p137 = por %p135, %p136
      %s139 = sadd.s32 %s138, 1
      %p142 = scmp.eq.s32.totalorder %s17, 3
      %p143 = scmp.ne.s32.totalorder %s138, %s140
      %p144 = scmp.eq.s32.totalorder %s17, 0
      %p145 = por %p143, %p144
      %p146 = scmp.ne.s32.totalorder %s138, %s140
      %p147 = scmp.eq.s32.totalorder %s22, 3
      %p148 = por %p146, %p147
      %p149 = scmp.ne.s32.totalorder %s140, %s141
      %p150 = scmp.eq.s32.totalorder %s22, 0
      %p151 = por %p149, %p150
      %p152 = scmp.ne.s32.totalorder %s140, %s141
      %p153 = scmp.eq.s32.totalorder %s23, 3
      %p154 = por %p152, %p153
      %p156 = scmp.ne.s32.totalorder %s141, %s155
      %p157 = scmp.eq.s32.totalorder %s23, 0
      %p158 = por %p156, %p157
      %s160 = sadd.s32 %s159, 1
      %p163 = scmp.eq.s32.totalorder %s17, 3
      %p164 = scmp.ne.s32.totalorder %s159, %s161
      %p165 = scmp.eq.s32.totalorder %s17, 0
      %p166 = por %p164, %p165
      %p167 = scmp.ne.s32.totalorder %s159, %s161
      %p168 = scmp.eq.s32.totalorder %s22, 3
      %p169 = por %p167, %p168
      %p170 = scmp.ne.s32.totalorder %s161, %s162
      %p171 = scmp.eq.s32.totalorder %s22, 0
      %p172 = por %p170, %p171
      %p173 = scmp.ne.s32.totalorder %s161, %s162
      %p174 = scmp.eq.s32.totalorder %s23, 3
      %p175 = por %p173, %p174
      %p177 = scmp.ne.s32.totalorder %s162, %s176
      %p178 = scmp.eq.s32.totalorder %s23, 0
      %p179 = por %p177, %p178
      %s181 = sadd.s32 %s180, 1
      %p184 = scmp.eq.s32.totalorder %s17, 3
      %p185 = scmp.ne.s32.totalorder %s180, %s182
      %p186 = scmp.eq.s32.totalorder %s17, 0
      %p187 = por %p185, %p186
      %p188 = scmp.ne.s32.totalorder %s180, %s182
      %p189 = scmp.eq.s32.totalorder %s22, 3
      %p190 = por %p188, %p189
      %p191 = scmp.ne.s32.totalorder %s182, %s183
      %p192 = scmp.eq.s32.totalorder %s22, 0
      %p193 = por %p191, %p192
      %p194 = scmp.ne.s32.totalorder %s182, %s183
      %p195 = scmp.eq.s32.totalorder %s23, 3
      %p196 = por %p194, %p195
      %p198 = scmp.ne.s32.totalorder %s183, %s197
      %p199 = scmp.eq.s32.totalorder %s23, 0
      %p200 = por %p198, %p199
      %s202 = sadd.s32 %s201, 1
      %p205 = scmp.eq.s32.totalorder %s17, 3
      %p206 = scmp.ne.s32.totalorder %s201, %s203
      %p207 = scmp.eq.s32.totalorder %s17, 0
      %p208 = por %p206, %p207
      %p209 = scmp.ne.s32.totalorder %s201, %s203
      %p210 = scmp.eq.s32.totalorder %s22, 3
      %p211 = por %p209, %p210
      %p212 = scmp.ne.s32.totalorder %s203, %s204
      %p213 = scmp.eq.s32.totalorder %s22, 0
      %p214 = por %p212, %p213
      %p215 = scmp.ne.s32.totalorder %s203, %s204
      %p216 = scmp.eq.s32.totalorder %s23, 3
      %p217 = por %p215, %p216
      %p219 = scmp.ne.s32.totalorder %s204, %s218
      %p220 = scmp.eq.s32.totalorder %s23, 0
      %p221 = por %p219, %p220
      %s223 = sadd.s32 %s222, 1
      %p226 = scmp.eq.s32.totalorder %s17, 3
      %p227 = scmp.ne.s32.totalorder %s222, %s224
      %p228 = scmp.eq.s32.totalorder %s17, 0
      %p229 = por %p227, %p228
      %p230 = scmp.ne.s32.totalorder %s222, %s224
      %p231 = scmp.eq.s32.totalorder %s22, 3
      %p232 = por %p230, %p231
      %p233 = scmp.ne.s32.totalorder %s224, %s225
      %p234 = scmp.eq.s32.totalorder %s22, 0
      %p235 = por %p233, %p234
      %p236 = scmp.ne.s32.totalorder %s224, %s225
      %p237 = scmp.eq.s32.totalorder %s23, 3
      %p238 = por %p236, %p237
      %p240 = scmp.ne.s32.totalorder %s225, %s239
      %p241 = scmp.eq.s32.totalorder %s23, 0
      %p242 = por %p240, %p241
      %s243 = ssub.s32 %s24, %s36
      %p244 = scmp.eq.s32.totalorder %s243, 0
      %s246 = sadd.s32 %s245, 1
      %s247 = scalar_select %p244, %s245, %s246
      %p250 = pneg %p244
      %p251 = scmp.eq.s32.totalorder %s17, 3
      %p252 = por %p250, %p251
      %p253 = scmp.ne.s32.totalorder %s245, %s248
      %p254 = scmp.eq.s32.totalorder %s17, 0
      %p255 = por %p253, %p254
      %p256 = scmp.ne.s32.totalorder %s245, %s248
      %p257 = scmp.eq.s32.totalorder %s22, 3
      %p258 = por %p256, %p257
      %p259 = scmp.ne.s32.totalorder %s248, %s249
      %p260 = scmp.eq.s32.totalorder %s22, 0
      %p261 = por %p259, %p260
      %p262 = scmp.ne.s32.totalorder %s248, %s249
      %p263 = scmp.eq.s32.totalorder %s23, 3
      %p264 = por %p262, %p263
      %p266 = scmp.ne.s32.totalorder %s249, %s265
      %p267 = scmp.eq.s32.totalorder %s23, 0
      %p268 = por %p266, %p267
      %s269 = ssub.s32 %s24, %s36
      %p270 = scmp.eq.s32.totalorder %s269, 0
      %s272 = sadd.s32 %s271, 1
      %s273 = scalar_select %p270, %s271, %s272
      %p276 = pneg %p270
      %p277 = scmp.eq.s32.totalorder %s17, 3
      %p278 = por %p276, %p277
      %p279 = scmp.ne.s32.totalorder %s271, %s274
      %p280 = scmp.eq.s32.totalorder %s17, 0
      %p281 = por %p279, %p280
      %p282 = scmp.ne.s32.totalorder %s271, %s274
      %p283 = scmp.eq.s32.totalorder %s22, 3
      %p284 = por %p282, %p283
      %p285 = scmp.ne.s32.totalorder %s274, %s275
      %p286 = scmp.eq.s32.totalorder %s22, 0
      %p287 = por %p285, %p286
      %p288 = scmp.ne.s32.totalorder %s274, %s275
      %p289 = scmp.eq.s32.totalorder %s23, 3
      %p290 = por %p288, %p289
      %p292 = scmp.ne.s32.totalorder %s275, %s291
      %p293 = scmp.eq.s32.totalorder %s23, 0
      %p294 = por %p292, %p293
      %p295 = scmp.le.s32.totalorder 1, %s17
      %p296 = scmp.lt.s32.totalorder %s17, 5
      %p297 = pnand %p295, %p296
      %p298 = pneg %p297
      // Predicated region
      $region9: #{_forward_impl.3} parent=5 // pred_check
        _
      $region10: #{_forward_impl.3} parent=5 // pred_check_branch
        %300 = sbr.rel (%p297) target = $region12
      $region11: #{_forward_impl.3} parent=5 // pred_region
        %s301 = ssub.s32 %s17, 1
        // Predicated region
        $region13: #{_forward_impl.3} parent=11 // pred_check
          %p302 = pneg %p130
        $region14: #{_forward_impl.3} parent=11 // pred_check_branch
          %304 = sbr.rel (%p302) target = $region16
        $region15: #{_forward_impl.3} parent=11 // pred_region
          _
        $region16: #{_forward_impl.3} parent=11 // pred_fallthru
          _
        // Predicated region
        $region17: #{_forward_impl.3} parent=11 // pred_check
          %p305 = pneg %p151
        $region18: #{_forward_impl.3} parent=11 // pred_check_branch
          %307 = sbr.rel (%p305) target = $region20
        $region19: #{_forward_impl.3} parent=11 // pred_region
          _
        $region20: #{_forward_impl.3} parent=11 // pred_fallthru
          _
        // Predicated region
        $region21: #{_forward_impl.3} parent=11 // pred_check
          %p308 = pneg %p172
        $region22: #{_forward_impl.3} parent=11 // pred_check_branch
          %310 = sbr.rel (%p308) target = $region24
        $region23: #{_forward_impl.3} parent=11 // pred_region
          _
        $region24: #{_forward_impl.3} parent=11 // pred_fallthru
          _
        // Predicated region
        $region25: #{_forward_impl.3} parent=11 // pred_check
          %p311 = pneg %p193
        $region26: #{_forward_impl.3} parent=11 // pred_check_branch
          %313 = sbr.rel (%p311) target = $region28
        $region27: #{_forward_impl.3} parent=11 // pred_region
          _
        $region28: #{_forward_impl.3} parent=11 // pred_fallthru
          _
        // Predicated region
        $region29: #{_forward_impl.3} parent=11 // pred_check
          %p314 = pneg %p214
        $region30: #{_forward_impl.3} parent=11 // pred_check_branch
          %316 = sbr.rel (%p314) target = $region32
        $region31: #{_forward_impl.3} parent=11 // pred_region
          _
        $region32: #{_forward_impl.3} parent=11 // pred_fallthru
          _
        // Predicated region
        $region33: #{_forward_impl.3} parent=11 // pred_check
          %p317 = pneg %p235
        $region34: #{_forward_impl.3} parent=11 // pred_check_branch
          %319 = sbr.rel (%p317) target = $region36
        $region35: #{_forward_impl.3} parent=11 // pred_region
          _
        $region36: #{_forward_impl.3} parent=11 // pred_fallthru
          _
      $region12: #{_forward_impl.3} parent=5 // pred_fallthru
        _
      %p320 = scmp.lt.s32.totalorder %s17, 4
      // Predicated region
      $region37: #{_forward_impl.3} parent=5 // pred_check
        %p321 = pneg %p320
      $region38: #{_forward_impl.3} parent=5 // pred_check_branch
        %323 = sbr.rel (%p321) target = $region40
      $region39: #{_forward_impl.3} parent=5 // pred_region
        // Predicated region
        $region41: #{_forward_impl.3} parent=39 // pred_check
          %p324 = pneg %p49
        $region42: #{_forward_impl.3} parent=39 // pred_check_branch
          %326 = sbr.rel (%p324) target = $region44
        $region43: #{_forward_impl.3} parent=39 // pred_region
          %s327 = smul.u32 16, %s24
          %p328 = scmp.lt.s32.totalorder %s327, 31
          %s329 = scalar_select %p328, %s327, 31
          %s330 = smul.addr %s329, 8
          %s331 = scalar_lea.vmem %s0, %s330
          %s332 = smul.u32 16, %s24
        $region44: #{_forward_impl.3} parent=39 // pred_fallthru
          _
        // Predicated region
        $region45: #{_forward_impl.3} parent=39 // pred_check
          %p333 = pneg %p77
        $region46: #{_forward_impl.3} parent=39 // pred_check_branch
          %335 = sbr.rel (%p333) target = $region48
        $region47: #{_forward_impl.3} parent=39 // pred_region
          %s336 = sand.u32 %s67, 1
          %s337 = sand.u32 %s67, 1
          %s338 = smul.addr %s337, 64
          %s339 = scalar_lea.vmem [#allocation3], %s338
          %s340 = smul.u32 16, %s25
          %s341 = smul.addr %s340, 2
          %s342 = sadd.s32 %s24, %s341
          %s343 = smul.addr %s342, 4
          %s344 = scalar_lea.vmem %s1, %s343
          // Predicated region
          $region49: #{_forward_impl.3} parent=47 // pred_check
            _
          $region50: #{_forward_impl.3} parent=47 // pred_check_branch
            %346 = sbr.rel (0) target = $region52
          $region51: #{_forward_impl.3} parent=47 // pred_region
            // Predicated region
            $region53: #{_forward_impl.3} parent=51 // pred_check
              _
            $region54: #{_forward_impl.3} parent=51 // pred_check_branch
              %348 = sbr.rel target = $region56
            $region55: #{_forward_impl.3} parent=51 // pred_region
              // Predicated region
              $region68: #{_forward_impl.3} parent=55 // pred_check
                _
              $region69: #{_forward_impl.3} parent=55 // pred_check_branch
                %394 = sbr.rel (0) target = $region71
              $region70: #{_forward_impl.3} parent=55 // pred_region
                loop: start=0, step=1, limit=1
                $region72: #{_forward_impl.3} parent=70 // loop_pre_header
                  _
                $region73: #{_forward_impl.3} parent=70 // loop_header
                  %s396 = sphi 0, %s400
                  %p397 = scmp.ge.s32.totalorder %s396, 1
                  %s401 = sphi %s344, %s344
                  %s402 = sphi %s339, %s339
                $region74: #{_forward_impl.3} parent=70 // loop_header_branch
                  %399 = sbr.rel (%p397) target = $region78
                $region75: #{_forward_impl.3} parent=70 // loop_body
                  _
                $region76: #{_forward_impl.3} parent=70 // loop_footer
                  %s400 = sadd.s32 1, %s396
                $region77: #{_forward_impl.3} parent=70 // loop_footer_branch
                  %395 = sbr.rel target = $region73
                $region78: #{_forward_impl.3} parent=70 // loop_exit
                  _
                %s404 = ssub.s32 16, 1
                loop: start=0, step=1, limit=1
                $region79: #{_forward_impl.3} parent=70 // loop_pre_header
                  _
                $region80: #{_forward_impl.3} parent=70 // loop_header
                  %s406 = sphi 0, %s410
                  %p407 = scmp.ge.s32.totalorder %s406, 1
                  %s411 = sphi %s344, %s344
                  %s412 = sphi %s339, %s339
                $region81: #{_forward_impl.3} parent=70 // loop_header_branch
                  %409 = sbr.rel (%p407) target = $region85
                $region82: #{_forward_impl.3} parent=70 // loop_body
                  %v413 = vld [vmem:[%s411] sm:%s404]
                  %414 = vst [vmem:[%s412] sm:%s404] %v413
                  %v415 = vld [vmem:[%s411 + $0x8] sm:%s404]
                  %416 = vst [vmem:[%s412 + $0x4] sm:%s404] %v415
                  %v417 = vld [vmem:[%s411 + $0x10] sm:%s404]
                  %418 = vst [vmem:[%s412 + $0x8] sm:%s404] %v417
                  %v419 = vld [vmem:[%s411 + $0x18] sm:%s404]
                  %420 = vst [vmem:[%s412 + $0xc] sm:%s404] %v419
                  %v421 = vld [vmem:[%s411 + $0x20] sm:%s404]
                  %422 = vst [vmem:[%s412 + $0x10] sm:%s404] %v421
                  %v423 = vld [vmem:[%s411 + $0x28] sm:%s404]
                  %424 = vst [vmem:[%s412 + $0x14] sm:%s404] %v423
                  %v425 = vld [vmem:[%s411 + $0x30] sm:%s404]
                  %426 = vst [vmem:[%s412 + $0x18] sm:%s404] %v425
                  %v427 = vld [vmem:[%s411 + $0x38] sm:%s404]
                  %428 = vst [vmem:[%s412 + $0x1c] sm:%s404] %v427
                  %v429 = vld [vmem:[%s411 + $0x40] sm:%s404]
                  %430 = vst [vmem:[%s412 + $0x20] sm:%s404] %v429
                  %v431 = vld [vmem:[%s411 + $0x48] sm:%s404]
                  %432 = vst [vmem:[%s412 + $0x24] sm:%s404] %v431
                  %v433 = vld [vmem:[%s411 + $0x50] sm:%s404]
                  %434 = vst [vmem:[%s412 + $0x28] sm:%s404] %v433
                  %v435 = vld [vmem:[%s411 + $0x58] sm:%s404]
                  %436 = vst [vmem:[%s412 + $0x2c] sm:%s404] %v435
                  %v437 = vld [vmem:[%s411 + $0x60] sm:%s404]
                  %438 = vst [vmem:[%s412 + $0x30] sm:%s404] %v437
                  %v439 = vld [vmem:[%s411 + $0x68] sm:%s404]
                  %440 = vst [vmem:[%s412 + $0x34] sm:%s404] %v439
                  %v441 = vld [vmem:[%s411 + $0x70] sm:%s404]
                  %442 = vst [vmem:[%s412 + $0x38] sm:%s404] %v441
                  %v443 = vld [vmem:[%s411 + $0x78] sm:%s404]
                  %444 = vst [vmem:[%s412 + $0x3c] sm:%s404] %v443
                $region83: #{_forward_impl.3} parent=70 // loop_footer
                  %s410 = sadd.s32 1, %s406
                $region84: #{_forward_impl.3} parent=70 // loop_footer_branch
                  %405 = sbr.rel target = $region80
                $region85: #{_forward_impl.3} parent=70 // loop_exit
                  _
              $region71: #{_forward_impl.3} parent=55 // pred_fallthru
                _
            $region56: #{_forward_impl.3} parent=51 // pred_fallthru
              _
            // Predicated region
            $region57: #{_forward_impl.3} parent=51 // pred_check
              _
            $region58: #{_forward_impl.3} parent=51 // pred_check_branch
              %350 = sbr.rel (0) target = $region60
            $region59: #{_forward_impl.3} parent=51 // pred_region
              %s352 = ssub.s32 16, 1
              loop: start=0, step=1, limit=1
              $region61: #{_forward_impl.3} parent=59 // loop_pre_header
                _
              $region62: #{_forward_impl.3} parent=59 // loop_header
                %s354 = sphi 0, %s358
                %p355 = scmp.ge.s32.totalorder %s354, 1
                %s359 = sphi %s344, %s344
                %s360 = sphi %s339, %s339
              $region63: #{_forward_impl.3} parent=59 // loop_header_branch
                %357 = sbr.rel (%p355) target = $region67
              $region64: #{_forward_impl.3} parent=59 // loop_body
                %v361 = vld [vmem:[%s359] sm:%s352]
                %362 = vst [vmem:[%s360] sm:%s352] %v361
                %v363 = vld [vmem:[%s359 + $0x8] sm:%s352]
                %364 = vst [vmem:[%s360 + $0x4] sm:%s352] %v363
                %v365 = vld [vmem:[%s359 + $0x10] sm:%s352]
                %366 = vst [vmem:[%s360 + $0x8] sm:%s352] %v365
                %v367 = vld [vmem:[%s359 + $0x18] sm:%s352]
                %368 = vst [vmem:[%s360 + $0xc] sm:%s352] %v367
                %v369 = vld [vmem:[%s359 + $0x20] sm:%s352]
                %370 = vst [vmem:[%s360 + $0x10] sm:%s352] %v369
                %v371 = vld [vmem:[%s359 + $0x28] sm:%s352]
                %372 = vst [vmem:[%s360 + $0x14] sm:%s352] %v371
                %v373 = vld [vmem:[%s359 + $0x30] sm:%s352]
                %374 = vst [vmem:[%s360 + $0x18] sm:%s352] %v373
                %v375 = vld [vmem:[%s359 + $0x38] sm:%s352]
                %376 = vst [vmem:[%s360 + $0x1c] sm:%s352] %v375
                %v377 = vld [vmem:[%s359 + $0x40] sm:%s352]
                %378 = vst [vmem:[%s360 + $0x20] sm:%s352] %v377
                %v379 = vld [vmem:[%s359 + $0x48] sm:%s352]
                %380 = vst [vmem:[%s360 + $0x24] sm:%s352] %v379
                %v381 = vld [vmem:[%s359 + $0x50] sm:%s352]
                %382 = vst [vmem:[%s360 + $0x28] sm:%s352] %v381
                %v383 = vld [vmem:[%s359 + $0x58] sm:%s352]
                %384 = vst [vmem:[%s360 + $0x2c] sm:%s352] %v383
                %v385 = vld [vmem:[%s359 + $0x60] sm:%s352]
                %386 = vst [vmem:[%s360 + $0x30] sm:%s352] %v385
                %v387 = vld [vmem:[%s359 + $0x68] sm:%s352]
                %388 = vst [vmem:[%s360 + $0x34] sm:%s352] %v387
                %v389 = vld [vmem:[%s359 + $0x70] sm:%s352]
                %390 = vst [vmem:[%s360 + $0x38] sm:%s352] %v389
                %v391 = vld [vmem:[%s359 + $0x78] sm:%s352]
                %392 = vst [vmem:[%s360 + $0x3c] sm:%s352] %v391
              $region65: #{_forward_impl.3} parent=59 // loop_footer
                %s358 = sadd.s32 1, %s354
              $region66: #{_forward_impl.3} parent=59 // loop_footer_branch
                %353 = sbr.rel target = $region62
              $region67: #{_forward_impl.3} parent=59 // loop_exit
                _
            $region60: #{_forward_impl.3} parent=51 // pred_fallthru
              _
          $region52: #{_forward_impl.3} parent=47 // pred_fallthru
            _
          %445 = vnop
        $region48: #{_forward_impl.3} parent=39 // pred_fallthru
          _
        // Predicated region
        $region86: #{_forward_impl.3} parent=39 // pred_check
          %p446 = pneg %p103
        $region87: #{_forward_impl.3} parent=39 // pred_check_branch
          %448 = sbr.rel (%p446) target = $region89
        $region88: #{_forward_impl.3} parent=39 // pred_region
          %s449 = smul.u32 16, %s25
          %p450 = scmp.lt.s32.totalorder %s449, 31
          %s451 = scalar_select %p450, %s449, 31
          %s452 = smul.addr %s451, 8
          %s453 = scalar_lea.vmem %s2, %s452
          %s454 = smul.u32 16, %s25
        $region89: #{_forward_impl.3} parent=39 // pred_fallthru
          _
      $region40: #{_forward_impl.3} parent=5 // pred_fallthru
        _
      %p455 = scmp.le.s32.totalorder 1, %s17
      %p456 = scmp.lt.s32.totalorder %s17, 5
      %p457 = pnand %p455, %p456
      %p458 = pneg %p457
      // Predicated region
      $region90: #{_forward_impl.3} parent=5 // pred_check
        _
      $region91: #{_forward_impl.3} parent=5 // pred_check_branch
        %460 = sbr.rel (%p457) target = $region93
      $region92: #{_forward_impl.3} parent=5 // pred_region
        %s461 = ssub.s32 %s17, 1
        %s462 = sand.u32 %s70, 1
        %s463 = sand.u32 %s70, 1
        %s464 = smul.addr %s463, 64
        %s465 = scalar_lea.vmem [#allocation3], %s464
        // Predicated region
        $region94: #{_forward_impl.3} parent=92 // pred_check
          %p466 = pneg %p83
        $region95: #{_forward_impl.3} parent=92 // pred_check_branch
          %468 = sbr.rel (%p466) target = $region97
        $region96: #{_forward_impl.3} parent=92 // pred_region
          _
        $region97: #{_forward_impl.3} parent=92 // pred_fallthru
          _
        %s469 = smul.u32 16, %s26
        %p470 = scmp.lt.s32.totalorder %s469, 31
        %s471 = scalar_select %p470, %s469, 31
        %s472 = smul.addr %s471, 8
        %s473 = scalar_lea.vmem %s0, %s472
        %p474 = pneg %p55
        %p475 = pneg %p52
        %s476 = sand.u32 %s70, 1
        %s477 = sand.u32 %s70, 1
        %s478 = smul.addr %s477, 64
        %s479 = scalar_lea.vmem [#allocation3], %s478
        %p480 = pneg %p83
        %p481 = pneg %p80
        %s482 = smul.u32 16, %s27
        %p483 = scmp.lt.s32.totalorder %s482, 31
        %s484 = scalar_select %p483, %s482, 31
        %s485 = smul.addr %s484, 8
        %s486 = scalar_lea.vmem %s2, %s485
        %p487 = pneg %p109
        %p488 = pneg %p106
        %p489 = pneg %p130
        %p490 = pneg %p127
        %p491 = pneg %p151
        %p492 = pneg %p148
        %p493 = pneg %p172
        %p494 = pneg %p169
        %p495 = pneg %p193
        %p496 = pneg %p190
        %p497 = pneg %p214
        %p498 = pneg %p211
        %p499 = pneg %p235
        %p500 = pneg %p232
        %p501 = pneg %p261
        %p502 = pneg %p258
        %s503 = smul.u32 16, %s26
        %p504 = scmp.lt.s32.totalorder %s503, 31
        %s505 = scalar_select %p504, %s503, 31
        %s506 = smul.addr %s505, 8
        %s507 = scalar_lea.vmem %s9, %s506
        %p508 = pneg %p287
        %p509 = pneg %p284
        %s510 = smul.u32 16, %s26
        %p511 = scmp.lt.s32.totalorder %s510, 31
        %s512 = scalar_select %p511, %s510, 31
        %s513 = smul.addr %s512, 8
        %s514 = scalar_lea.vmem %s10, %s513
        %s515 = smul.u32 16, %s26
        %p516 = scmp.lt.s32.totalorder %s515, 31
        %s517 = scalar_select %p516, %s515, 31
        %s518 = smul.addr %s517, 8
        %s519 = scalar_lea.vmem %s0, %s518
        %s520 = smul.u32 16, %s26
        %s521 = smul.u32 16, %s27
        %s522 = smul.u32 16, %s27
        %p523 = scmp.lt.s32.totalorder %s522, 31
        %s524 = scalar_select %p523, %s522, 31
        %s525 = smul.addr %s524, 8
        %s526 = scalar_lea.vmem %s2, %s525
        %s527 = smul.u32 16, %s27
        %s528 = smul.u32 16, %s26
        %p529 = scmp.lt.s32.totalorder %s528, 31
        %s530 = scalar_select %p529, %s528, 31
        %s531 = smul.addr %s530, 8
        %s532 = scalar_lea.vmem %s9, %s531
        %s533 = smul.u32 16, %s26
        %s534 = smul.u32 16, %s26
        %p535 = scmp.lt.s32.totalorder %s534, 31
        %s536 = scalar_select %p535, %s534, 31
        %s537 = smul.addr %s536, 8
        %s538 = scalar_lea.vmem %s10, %s537
        %s539 = smul.u32 16, %s26
        %p540 = scmp.eq.s32.totalorder %s27, 0
        // Predicated region
        $region98: #{_forward_impl.3} parent=92 // pred_check
          %p541 = pneg %p540
        $region99: #{_forward_impl.3} parent=92 // pred_check_branch
          %543 = sbr.rel (%p541) target = $region101
        $region100: #{_forward_impl.3} parent=92 // pred_region
          %vm544 = vcmask 523264
          %545 = vst.msk [vmem:[#allocation2] sm:$0xff] %vm544, 0.0
          %546 = vst.msk [vmem:[#allocation2 + $0x8] sm:$0xff] %vm544, 0.0
          %547 = vst.msk [vmem:[#allocation2 + $0x10] sm:$0xff] %vm544, 0.0
          %548 = vst.msk [vmem:[#allocation2 + $0x18] sm:$0xff] %vm544, 0.0
          %549 = vst.msk [vmem:[#allocation2 + $0x20] sm:$0xff] %vm544, 0.0
          %550 = vst.msk [vmem:[#allocation2 + $0x28] sm:$0xff] %vm544, 0.0
          %551 = vst.msk [vmem:[#allocation2 + $0x30] sm:$0xff] %vm544, 0.0
          %552 = vst.msk [vmem:[#allocation2 + $0x38] sm:$0xff] %vm544, 0.0
          %553 = vst.msk [vmem:[#allocation2 + $0x40] sm:$0xff] %vm544, 0.0
          %554 = vst.msk [vmem:[#allocation2 + $0x48] sm:$0xff] %vm544, 0.0
          %555 = vst.msk [vmem:[#allocation2 + $0x50] sm:$0xff] %vm544, 0.0
          %556 = vst.msk [vmem:[#allocation2 + $0x58] sm:$0xff] %vm544, 0.0
          %557 = vst.msk [vmem:[#allocation2 + $0x60] sm:$0xff] %vm544, 0.0
          %558 = vst.msk [vmem:[#allocation2 + $0x68] sm:$0xff] %vm544, 0.0
          %559 = vst.msk [vmem:[#allocation2 + $0x70] sm:$0xff] %vm544, 0.0
          %560 = vst.msk [vmem:[#allocation2 + $0x78] sm:$0xff] %vm544, 0.0
        $region101: #{_forward_impl.3} parent=92 // pred_fallthru
          _
        %v561 = vld [vmem:[%s465] sm:$0xf]
        %v562 = vld [vmem:[%s465 + $0x4] sm:$0xf]
        %v563 = vld [vmem:[%s465 + $0x8] sm:$0xf]
        %v564 = vld [vmem:[%s465 + $0xc] sm:$0xf]
        %v565 = vld [vmem:[%s465 + $0x10] sm:$0xf]
        %v566 = vld [vmem:[%s465 + $0x14] sm:$0xf]
        %v567 = vld [vmem:[%s465 + $0x18] sm:$0xf]
        %v568 = vld [vmem:[%s465 + $0x1c] sm:$0xf]
        %v569 = vld [vmem:[%s465 + $0x20] sm:$0xf]
        %v570 = vld [vmem:[%s465 + $0x24] sm:$0xf]
        %v571 = vld [vmem:[%s465 + $0x28] sm:$0xf]
        %v572 = vld [vmem:[%s465 + $0x2c] sm:$0xf]
        %v573 = vld [vmem:[%s465 + $0x30] sm:$0xf]
        %v574 = vld [vmem:[%s465 + $0x34] sm:$0xf]
        %v575 = vld [vmem:[%s465 + $0x38] sm:$0xf]
        %v576 = vld [vmem:[%s465 + $0x3c] sm:$0xf]
        %v577 = vunpack.c.l.bf16 %v561
        %v578 = vunpack.c.l.bf16 %v562
        %v579 = vunpack.c.l.bf16 %v563
        %v580 = vunpack.c.l.bf16 %v564
        %v581 = vunpack.c.l.bf16 %v565
        %v582 = vunpack.c.l.bf16 %v566
        %v583 = vunpack.c.l.bf16 %v567
        %v584 = vunpack.c.l.bf16 %v568
        %v585 = vunpack.c.l.bf16 %v569
        %v586 = vunpack.c.l.bf16 %v570
        %v587 = vunpack.c.l.bf16 %v571
        %v588 = vunpack.c.l.bf16 %v572
        %v589 = vunpack.c.l.bf16 %v573
        %v590 = vunpack.c.l.bf16 %v574
        %v591 = vunpack.c.l.bf16 %v575
        %v592 = vunpack.c.l.bf16 %v576
        %593 = vxpose.xlu0.b32.start [1/16] %v577, 128
        %594 = vxpose.xlu0.b32.cont [2/16] %v578, 128
        %595 = vxpose.xlu0.b32.cont [3/16] %v579, 128
        %596 = vxpose.xlu0.b32.cont [4/16] %v580, 128
        %597 = vxpose.xlu0.b32.cont [5/16] %v581, 128
        %598 = vxpose.xlu0.b32.cont [6/16] %v582, 128
        %599 = vxpose.xlu0.b32.cont [7/16] %v583, 128
        %600 = vxpose.xlu0.b32.cont [8/16] %v584, 128
        %601 = vxpose.xlu0.b32.cont [9/16] %v585, 128
        %602 = vxpose.xlu0.b32.cont [10/16] %v586, 128
        %603 = vxpose.xlu0.b32.cont [11/16] %v587, 128
        %604 = vxpose.xlu0.b32.cont [12/16] %v588, 128
        %605 = vxpose.xlu0.b32.cont [13/16] %v589, 128
        %606 = vxpose.xlu0.b32.cont [14/16] %v590, 128
        %607 = vxpose.xlu0.b32.cont [15/16] %v591, 128
        %608 = vxpose.xlu0.b32.end [16/16] %v592, 128
        %v609 = vpop.trf.xlu0
        %v610 = vpop.trf.xlu0
        %v611 = vpop.trf.xlu0
        %v612 = vpop.trf.xlu0
        %v613 = vpop.trf.xlu0
        %v614 = vpop.trf.xlu0
        %v615 = vpop.trf.xlu0
        %v616 = vpop.trf.xlu0
        %v617 = vpop.trf.xlu0
        %v618 = vpop.trf.xlu0
        %v619 = vpop.trf.xlu0
        %v620 = vpop.trf.xlu0
        %v621 = vpop.trf.xlu0
        %v622 = vpop.trf.xlu0
        %v623 = vpop.trf.xlu0
        %v624 = vpop.trf.xlu0
        %v625 = vld [vmem:[#allocation2] sm:$0xff]
        %v626 = vld [vmem:[#allocation2 + $0x8] sm:$0xff]
        %v627 = vld [vmem:[#allocation2 + $0x10] sm:$0xff]
        %v628 = vld [vmem:[#allocation2 + $0x18] sm:$0xff]
        %v629 = vld [vmem:[#allocation2 + $0x20] sm:$0xff]
        %v630 = vld [vmem:[#allocation2 + $0x28] sm:$0xff]
        %v631 = vld [vmem:[#allocation2 + $0x30] sm:$0xff]
        %v632 = vld [vmem:[#allocation2 + $0x38] sm:$0xff]
        %v633 = vld [vmem:[#allocation2 + $0x40] sm:$0xff]
        %v634 = vld [vmem:[#allocation2 + $0x48] sm:$0xff]
        %v635 = vld [vmem:[#allocation2 + $0x50] sm:$0xff]
        %v636 = vld [vmem:[#allocation2 + $0x58] sm:$0xff]
        %v637 = vld [vmem:[#allocation2 + $0x60] sm:$0xff]
        %v638 = vld [vmem:[#allocation2 + $0x68] sm:$0xff]
        %v639 = vld [vmem:[#allocation2 + $0x70] sm:$0xff]
        %v640 = vld [vmem:[#allocation2 + $0x78] sm:$0xff]
        %v641 = vld [vmem:[%s526] sm:$0xff]
        %v642 = vld [vmem:[%s526 + $0x8] sm:$0xff]
        %v643 = vld [vmem:[%s526 + $0x10] sm:$0xff]
        %v644 = vld [vmem:[%s526 + $0x18] sm:$0xff]
        %v645 = vld [vmem:[%s526 + $0x20] sm:$0xff]
        %v646 = vld [vmem:[%s526 + $0x28] sm:$0xff]
        %v647 = vld [vmem:[%s526 + $0x30] sm:$0xff]
        %v648 = vld [vmem:[%s526 + $0x38] sm:$0xff]
        %v649 = vld [vmem:[%s526 + $0x40] sm:$0xff]
        %v650 = vld [vmem:[%s526 + $0x48] sm:$0xff]
        %v651 = vld [vmem:[%s526 + $0x50] sm:$0xff]
        %v652 = vld [vmem:[%s526 + $0x58] sm:$0xff]
        %v653 = vld [vmem:[%s526 + $0x60] sm:$0xff]
        %v654 = vld [vmem:[%s526 + $0x68] sm:$0xff]
        %v655 = vld [vmem:[%s526 + $0x70] sm:$0xff]
        %v656 = vld [vmem:[%s526 + $0x78] sm:$0xff]
        %657 = vmatpush.msra.mxu0 %v656
        %658 = vmatpush.msra.mxu0 %v655
        %659 = vmatpush.msra.mxu0 %v654
        %660 = vmatpush.msra.mxu0 %v653
        %661 = vmatpush.msra.mxu0 %v652
        %662 = vmatpush.msra.mxu0 %v651
        %663 = vmatpush.msra.mxu0 %v650
        %664 = vmatpush.msra.mxu0 %v649
        %665 = vmatpush.msra.mxu0 %v648
        %666 = vmatpush.msra.mxu0 %v647
        %667 = vmatpush.msra.mxu0 %v646
        %668 = vmatpush.msra.mxu0 %v645
        %669 = vmatpush.msra.mxu0 %v644
        %670 = vmatpush.msra.mxu0 %v643
        %671 = vmatpush.msra.mxu0 %v642
        %672 = vmatpush.msra.mxu0 %v641
        %673 = vmatmul.f32.gmra.mxu0 %v609
        %v674 = vpop.f32.mrf.mxu0
        %v675 = vadd.f32 0.0, %v674
        %676 = vmatmul.f32.gmra.mxu0 %v610
        %v677 = vpop.f32.mrf.mxu0
        %v678 = vadd.f32 0.0, %v677
        %679 = vmatmul.f32.gmra.mxu0 %v611
        %v680 = vpop.f32.mrf.mxu0
        %v681 = vadd.f32 0.0, %v680
        %682 = vmatmul.f32.gmra.mxu0 %v612
        %v683 = vpop.f32.mrf.mxu0
        %v684 = vadd.f32 0.0, %v683
        %685 = vmatmul.f32.gmra.mxu0 %v613
        %v686 = vpop.f32.mrf.mxu0
        %v687 = vadd.f32 0.0, %v686
        %688 = vmatmul.f32.gmra.mxu0 %v614
        %v689 = vpop.f32.mrf.mxu0
        %v690 = vadd.f32 0.0, %v689
        %691 = vmatmul.f32.gmra.mxu0 %v615
        %v692 = vpop.f32.mrf.mxu0
        %v693 = vadd.f32 0.0, %v692
        %694 = vmatmul.f32.gmra.mxu0 %v616
        %v695 = vpop.f32.mrf.mxu0
        %v696 = vadd.f32 0.0, %v695
        %697 = vmatmul.f32.gmra.mxu0 %v617
        %v698 = vpop.f32.mrf.mxu0
        %v699 = vadd.f32 0.0, %v698
        %700 = vmatmul.f32.gmra.mxu0 %v618
        %v701 = vpop.f32.mrf.mxu0
        %v702 = vadd.f32 0.0, %v701
        %703 = vmatmul.f32.gmra.mxu0 %v619
        %v704 = vpop.f32.mrf.mxu0
        %v705 = vadd.f32 0.0, %v704
        %706 = vmatmul.f32.gmra.mxu0 %v620
        %v707 = vpop.f32.mrf.mxu0
        %v708 = vadd.f32 0.0, %v707
        %709 = vmatmul.f32.gmra.mxu0 %v621
        %v710 = vpop.f32.mrf.mxu0
        %v711 = vadd.f32 0.0, %v710
        %712 = vmatmul.f32.gmra.mxu0 %v622
        %v713 = vpop.f32.mrf.mxu0
        %v714 = vadd.f32 0.0, %v713
        %715 = vmatmul.f32.gmra.mxu0 %v623
        %v716 = vpop.f32.mrf.mxu0
        %v717 = vadd.f32 0.0, %v716
        %718 = vmatmul.f32.gmra.mxu0 %v624
        %v719 = vpop.f32.mrf.mxu0
        %v720 = vadd.f32 0.0, %v719
        %721 = vdwg.mxu0
        %v722 = vadd.f32 %v625, %v675
        %v723 = vadd.f32 %v626, %v678
        %v724 = vadd.f32 %v627, %v681
        %v725 = vadd.f32 %v628, %v684
        %v726 = vadd.f32 %v629, %v687
        %v727 = vadd.f32 %v630, %v690
        %v728 = vadd.f32 %v631, %v693
        %v729 = vadd.f32 %v632, %v696
        %v730 = vadd.f32 %v633, %v699
        %v731 = vadd.f32 %v634, %v702
        %v732 = vadd.f32 %v635, %v705
        %v733 = vadd.f32 %v636, %v708
        %v734 = vadd.f32 %v637, %v711
        %v735 = vadd.f32 %v638, %v714
        %v736 = vadd.f32 %v639, %v717
        %v737 = vadd.f32 %v640, %v720
        %vm738 = vcmask 523264
        %739 = vst.msk [vmem:[#allocation2] sm:$0xff] %vm738, %v722
        %740 = vst.msk [vmem:[#allocation2 + $0x8] sm:$0xff] %vm738, %v723
        %741 = vst.msk [vmem:[#allocation2 + $0x10] sm:$0xff] %vm738, %v724
        %742 = vst.msk [vmem:[#allocation2 + $0x18] sm:$0xff] %vm738, %v725
        %743 = vst.msk [vmem:[#allocation2 + $0x20] sm:$0xff] %vm738, %v726
        %744 = vst.msk [vmem:[#allocation2 + $0x28] sm:$0xff] %vm738, %v727
        %745 = vst.msk [vmem:[#allocation2 + $0x30] sm:$0xff] %vm738, %v728
        %746 = vst.msk [vmem:[#allocation2 + $0x38] sm:$0xff] %vm738, %v729
        %747 = vst.msk [vmem:[#allocation2 + $0x40] sm:$0xff] %vm738, %v730
        %748 = vst.msk [vmem:[#allocation2 + $0x48] sm:$0xff] %vm738, %v731
        %749 = vst.msk [vmem:[#allocation2 + $0x50] sm:$0xff] %vm738, %v732
        %750 = vst.msk [vmem:[#allocation2 + $0x58] sm:$0xff] %vm738, %v733
        %751 = vst.msk [vmem:[#allocation2 + $0x60] sm:$0xff] %vm738, %v734
        %752 = vst.msk [vmem:[#allocation2 + $0x68] sm:$0xff] %vm738, %v735
        %753 = vst.msk [vmem:[#allocation2 + $0x70] sm:$0xff] %vm738, %v736
        %754 = vst.msk [vmem:[#allocation2 + $0x78] sm:$0xff] %vm738, %v737
        %p755 = scmp.eq.s32.totalorder %s27, 1
        // Predicated region
        $region102: #{_forward_impl.3} parent=92 // pred_check
          %p756 = pneg %p755
        $region103: #{_forward_impl.3} parent=92 // pred_check_branch
          %758 = sbr.rel (%p756) target = $region105
        $region104: #{_forward_impl.3} parent=92 // pred_region
          %v759 = vld [vmem:[#allocation2] sm:$0xff]
          %v760 = vld [vmem:[#allocation2 + $0x8] sm:$0xff]
          %v761 = vld [vmem:[#allocation2 + $0x10] sm:$0xff]
          %v762 = vld [vmem:[#allocation2 + $0x18] sm:$0xff]
          %v763 = vld [vmem:[#allocation2 + $0x20] sm:$0xff]
          %v764 = vld [vmem:[#allocation2 + $0x28] sm:$0xff]
          %v765 = vld [vmem:[#allocation2 + $0x30] sm:$0xff]
          %v766 = vld [vmem:[#allocation2 + $0x38] sm:$0xff]
          %v767 = vld [vmem:[#allocation2 + $0x40] sm:$0xff]
          %v768 = vld [vmem:[#allocation2 + $0x48] sm:$0xff]
          %v769 = vld [vmem:[#allocation2 + $0x50] sm:$0xff]
          %v770 = vld [vmem:[#allocation2 + $0x58] sm:$0xff]
          %v771 = vld [vmem:[#allocation2 + $0x60] sm:$0xff]
          %v772 = vld [vmem:[#allocation2 + $0x68] sm:$0xff]
          %v773 = vld [vmem:[#allocation2 + $0x70] sm:$0xff]
          %v774 = vld [vmem:[#allocation2 + $0x78] sm:$0xff]
          %v775 = vld [vmem:[%s519] sm:$0xff]
          %v776 = vld [vmem:[%s519 + $0x8] sm:$0xff]
          %v777 = vld [vmem:[%s519 + $0x10] sm:$0xff]
          %v778 = vld [vmem:[%s519 + $0x18] sm:$0xff]
          %v779 = vld [vmem:[%s519 + $0x20] sm:$0xff]
          %v780 = vld [vmem:[%s519 + $0x28] sm:$0xff]
          %v781 = vld [vmem:[%s519 + $0x30] sm:$0xff]
          %v782 = vld [vmem:[%s519 + $0x38] sm:$0xff]
          %v783 = vld [vmem:[%s519 + $0x40] sm:$0xff]
          %v784 = vld [vmem:[%s519 + $0x48] sm:$0xff]
          %v785 = vld [vmem:[%s519 + $0x50] sm:$0xff]
          %v786 = vld [vmem:[%s519 + $0x58] sm:$0xff]
          %v787 = vld [vmem:[%s519 + $0x60] sm:$0xff]
          %v788 = vld [vmem:[%s519 + $0x68] sm:$0xff]
          %v789 = vld [vmem:[%s519 + $0x70] sm:$0xff]
          %v790 = vld [vmem:[%s519 + $0x78] sm:$0xff]
          %v791 = vld [vmem:[%s3] sm:$0xff]
          %v792 = vld [vmem:[%s3 + $0x8] sm:$0xff]
          %v793 = vld [vmem:[%s3 + $0x10] sm:$0xff]
          %v794 = vld [vmem:[%s3 + $0x18] sm:$0xff]
          %v795 = vld [vmem:[%s4] sm:$0xff]
          %v796 = vld [vmem:[%s4 + $0x8] sm:$0xff]
          %v797 = vld [vmem:[%s4 + $0x10] sm:$0xff]
          %v798 = vld [vmem:[%s4 + $0x18] sm:$0xff]
          %v799 = vld [vmem:[%s4 + $0x20] sm:$0xff]
          %v800 = vld [vmem:[%s4 + $0x28] sm:$0xff]
          %v801 = vld [vmem:[%s4 + $0x30] sm:$0xff]
          %v802 = vld [vmem:[%s4 + $0x38] sm:$0xff]
          %v804 = vsel %vm738, %v759, 0
          %v807 = vsel %vm738, %v760, 0
          %v810 = vsel %vm738, %v761, 0
          %v813 = vsel %vm738, %v762, 0
          %v816 = vsel %vm738, %v763, 0
          %v819 = vsel %vm738, %v764, 0
          %v822 = vsel %vm738, %v765, 0
          %v825 = vsel %vm738, %v766, 0
          %v828 = vsel %vm738, %v767, 0
          %v831 = vsel %vm738, %v768, 0
          %v834 = vsel %vm738, %v769, 0
          %v837 = vsel %vm738, %v770, 0
          %v840 = vsel %vm738, %v771, 0
          %v843 = vsel %vm738, %v772, 0
          %v846 = vsel %vm738, %v773, 0
          %v849 = vsel %vm738, %v774, 0
          %851 = vmatpush.msra.mxu0 0.0
          %852 = vmatpush.msra.mxu0 0.0
          %853 = vmatpush.msra.mxu0 0.0
          %854 = vmatpush.msra.mxu0 0.0
          %855 = vmatpush.msra.mxu0 0.0
          %856 = vmatpush.msra.mxu0 0.0
          %857 = vmatpush.msra.mxu0 0.0
          %858 = vmatpush.msra.mxu0 0.0
          %859 = vmatpush.msra.mxu0 %v802
          %860 = vmatpush.msra.mxu0 %v801
          %861 = vmatpush.msra.mxu0 %v800
          %862 = vmatpush.msra.mxu0 %v799
          %863 = vmatpush.msra.mxu0 %v798
          %864 = vmatpush.msra.mxu0 %v797
          %865 = vmatpush.msra.mxu0 %v796
          %866 = vmatpush.msra.mxu0 %v795
          %867 = vmatmul.f32.gmra.mxu0 %v804
          %v868 = vpop.f32.mrf.mxu0
          %v869 = vadd.f32 0.0, %v868
          %870 = vmatmul.f32.gmra.mxu0 %v807
          %v871 = vpop.f32.mrf.mxu0
          %v872 = vadd.f32 0.0, %v871
          %873 = vmatmul.f32.gmra.mxu0 %v810
          %v874 = vpop.f32.mrf.mxu0
          %v875 = vadd.f32 0.0, %v874
          %876 = vmatmul.f32.gmra.mxu0 %v813
          %v877 = vpop.f32.mrf.mxu0
          %v878 = vadd.f32 0.0, %v877
          %879 = vmatmul.f32.gmra.mxu0 %v816
          %v880 = vpop.f32.mrf.mxu0
          %v881 = vadd.f32 0.0, %v880
          %882 = vmatmul.f32.gmra.mxu0 %v819
          %v883 = vpop.f32.mrf.mxu0
          %v884 = vadd.f32 0.0, %v883
          %885 = vmatmul.f32.gmra.mxu0 %v822
          %v886 = vpop.f32.mrf.mxu0
          %v887 = vadd.f32 0.0, %v886
          %888 = vmatmul.f32.gmra.mxu0 %v825
          %v889 = vpop.f32.mrf.mxu0
          %v890 = vadd.f32 0.0, %v889
          %891 = vmatmul.f32.gmra.mxu0 %v828
          %v892 = vpop.f32.mrf.mxu0
          %v893 = vadd.f32 0.0, %v892
          %894 = vmatmul.f32.gmra.mxu0 %v831
          %v895 = vpop.f32.mrf.mxu0
          %v896 = vadd.f32 0.0, %v895
          %897 = vmatmul.f32.gmra.mxu0 %v834
          %v898 = vpop.f32.mrf.mxu0
          %v899 = vadd.f32 0.0, %v898
          %900 = vmatmul.f32.gmra.mxu0 %v837
          %v901 = vpop.f32.mrf.mxu0
          %v902 = vadd.f32 0.0, %v901
          %903 = vmatmul.f32.gmra.mxu0 %v840
          %v904 = vpop.f32.mrf.mxu0
          %v905 = vadd.f32 0.0, %v904
          %906 = vmatmul.f32.gmra.mxu0 %v843
          %v907 = vpop.f32.mrf.mxu0
          %v908 = vadd.f32 0.0, %v907
          %909 = vmatmul.f32.gmra.mxu0 %v846
          %v910 = vpop.f32.mrf.mxu0
          %v911 = vadd.f32 0.0, %v910
          %912 = vmatmul.f32.gmra.mxu0 %v849
          %v913 = vpop.f32.mrf.mxu0
          %v914 = vadd.f32 0.0, %v913
          %915 = vdwg.mxu0
          %vm916 = vcmask 261120
          %v918 = vsel %vm916, %v775, 0
          %v921 = vsel %vm916, %v776, 0
          %v924 = vsel %vm916, %v777, 0
          %v927 = vsel %vm916, %v778, 0
          %v930 = vsel %vm916, %v779, 0
          %v933 = vsel %vm916, %v780, 0
          %v936 = vsel %vm916, %v781, 0
          %v939 = vsel %vm916, %v782, 0
          %v942 = vsel %vm916, %v783, 0
          %v945 = vsel %vm916, %v784, 0
          %v948 = vsel %vm916, %v785, 0
          %v951 = vsel %vm916, %v786, 0
          %v954 = vsel %vm916, %v787, 0
          %v957 = vsel %vm916, %v788, 0
          %v960 = vsel %vm916, %v789, 0
          %v963 = vsel %vm916, %v790, 0
          %965 = vmatpush.msra.mxu0 0.0
          %966 = vmatpush.msra.mxu0 0.0
          %967 = vmatpush.msra.mxu0 0.0
          %968 = vmatpush.msra.mxu0 0.0
          %969 = vmatpush.msra.mxu0 0.0
          %970 = vmatpush.msra.mxu0 0.0
          %971 = vmatpush.msra.mxu0 0.0
          %972 = vmatpush.msra.mxu0 0.0
          %973 = vmatpush.msra.mxu0 0.0
          %974 = vmatpush.msra.mxu0 0.0
          %975 = vmatpush.msra.mxu0 0.0
          %976 = vmatpush.msra.mxu0 0.0
          %977 = vmatpush.msra.mxu0 %v794
          %978 = vmatpush.msra.mxu0 %v793
          %979 = vmatpush.msra.mxu0 %v792
          %980 = vmatpush.msra.mxu0 %v791
          %981 = vmatmul.f32.gmra.mxu0 %v918
          %v982 = vpop.f32.mrf.mxu0
          %v983 = vadd.f32 %v869, %v982
          %984 = vmatmul.f32.gmra.mxu0 %v921
          %v985 = vpop.f32.mrf.mxu0
          %v986 = vadd.f32 %v872, %v985
          %987 = vmatmul.f32.gmra.mxu0 %v924
          %v988 = vpop.f32.mrf.mxu0
          %v989 = vadd.f32 %v875, %v988
          %990 = vmatmul.f32.gmra.mxu0 %v927
          %v991 = vpop.f32.mrf.mxu0
          %v992 = vadd.f32 %v878, %v991
          %993 = vmatmul.f32.gmra.mxu0 %v930
          %v994 = vpop.f32.mrf.mxu0
          %v995 = vadd.f32 %v881, %v994
          %996 = vmatmul.f32.gmra.mxu0 %v933
          %v997 = vpop.f32.mrf.mxu0
          %v998 = vadd.f32 %v884, %v997
          %999 = vmatmul.f32.gmra.mxu0 %v936
          %v1000 = vpop.f32.mrf.mxu0
          %v1001 = vadd.f32 %v887, %v1000
          %1002 = vmatmul.f32.gmra.mxu0 %v939
          %v1003 = vpop.f32.mrf.mxu0
          %v1004 = vadd.f32 %v890, %v1003
          %1005 = vmatmul.f32.gmra.mxu0 %v942
          %v1006 = vpop.f32.mrf.mxu0
          %v1007 = vadd.f32 %v893, %v1006
          %1008 = vmatmul.f32.gmra.mxu0 %v945
          %v1009 = vpop.f32.mrf.mxu0
          %v1010 = vadd.f32 %v896, %v1009
          %1011 = vmatmul.f32.gmra.mxu0 %v948
          %v1012 = vpop.f32.mrf.mxu0
          %v1013 = vadd.f32 %v899, %v1012
          %1014 = vmatmul.f32.gmra.mxu0 %v951
          %v1015 = vpop.f32.mrf.mxu0
          %v1016 = vadd.f32 %v902, %v1015
          %1017 = vmatmul.f32.gmra.mxu0 %v954
          %v1018 = vpop.f32.mrf.mxu0
          %v1019 = vadd.f32 %v905, %v1018
          %1020 = vmatmul.f32.gmra.mxu0 %v957
          %v1021 = vpop.f32.mrf.mxu0
          %v1022 = vadd.f32 %v908, %v1021
          %1023 = vmatmul.f32.gmra.mxu0 %v960
          %v1024 = vpop.f32.mrf.mxu0
          %v1025 = vadd.f32 %v911, %v1024
          %1026 = vmatmul.f32.gmra.mxu0 %v963
          %v1027 = vpop.f32.mrf.mxu0
          %v1028 = vadd.f32 %v914, %v1027
          %1029 = vdwg.mxu0
          %v1030 = vld [vmem:[%s5] sm:$0x1]
          %v1032 = vperm.slane %v1030, 0
          %v1034 = vadd.f32 %v983, %v1032
          %v1035 = vadd.f32 %v986, %v1032
          %v1036 = vadd.f32 %v989, %v1032
          %v1037 = vadd.f32 %v992, %v1032
          %v1038 = vadd.f32 %v995, %v1032
          %v1039 = vadd.f32 %v998, %v1032
          %v1040 = vadd.f32 %v1001, %v1032
          %v1041 = vadd.f32 %v1004, %v1032
          %v1042 = vadd.f32 %v1007, %v1032
          %v1043 = vadd.f32 %v1010, %v1032
          %v1044 = vadd.f32 %v1013, %v1032
          %v1045 = vadd.f32 %v1016, %v1032
          %v1046 = vadd.f32 %v1019, %v1032
          %v1047 = vadd.f32 %v1022, %v1032
          %v1048 = vadd.f32 %v1025, %v1032
          %v1049 = vadd.f32 %v1028, %v1032
          %v1050 = vmax.f32 %v1034, 0.0
          %v1051 = vmax.f32 %v1035, 0.0
          %v1052 = vmax.f32 %v1036, 0.0
          %v1053 = vmax.f32 %v1037, 0.0
          %v1054 = vmax.f32 %v1038, 0.0
          %v1055 = vmax.f32 %v1039, 0.0
          %v1056 = vmax.f32 %v1040, 0.0
          %v1057 = vmax.f32 %v1041, 0.0
          %v1058 = vmax.f32 %v1042, 0.0
          %v1059 = vmax.f32 %v1043, 0.0
          %v1060 = vmax.f32 %v1044, 0.0
          %v1061 = vmax.f32 %v1045, 0.0
          %v1062 = vmax.f32 %v1046, 0.0
          %v1063 = vmax.f32 %v1047, 0.0
          %v1064 = vmax.f32 %v1048, 0.0
          %v1065 = vmax.f32 %v1049, 0.0
          %1066 = vst.msk [vmem:[%s532] sm:$0xff] %vm916, %v1050
          %1067 = vst.msk [vmem:[%s532 + $0x8] sm:$0xff] %vm916, %v1051
          %1068 = vst.msk [vmem:[%s532 + $0x10] sm:$0xff] %vm916, %v1052
          %1069 = vst.msk [vmem:[%s532 + $0x18] sm:$0xff] %vm916, %v1053
          %1070 = vst.msk [vmem:[%s532 + $0x20] sm:$0xff] %vm916, %v1054
          %1071 = vst.msk [vmem:[%s532 + $0x28] sm:$0xff] %vm916, %v1055
          %1072 = vst.msk [vmem:[%s532 + $0x30] sm:$0xff] %vm916, %v1056
          %1073 = vst.msk [vmem:[%s532 + $0x38] sm:$0xff] %vm916, %v1057
          %1074 = vst.msk [vmem:[%s532 + $0x40] sm:$0xff] %vm916, %v1058
          %1075 = vst.msk [vmem:[%s532 + $0x48] sm:$0xff] %vm916, %v1059
          %1076 = vst.msk [vmem:[%s532 + $0x50] sm:$0xff] %vm916, %v1060
          %1077 = vst.msk [vmem:[%s532 + $0x58] sm:$0xff] %vm916, %v1061
          %1078 = vst.msk [vmem:[%s532 + $0x60] sm:$0xff] %vm916, %v1062
          %1079 = vst.msk [vmem:[%s532 + $0x68] sm:$0xff] %vm916, %v1063
          %1080 = vst.msk [vmem:[%s532 + $0x70] sm:$0xff] %vm916, %v1064
          %1081 = vst.msk [vmem:[%s532 + $0x78] sm:$0xff] %vm916, %v1065
          %v1082 = vld [vmem:[%s6] sm:$0xff]
          %v1083 = vld [vmem:[%s6 + $0x8] sm:$0xff]
          %v1084 = vld [vmem:[%s6 + $0x10] sm:$0xff]
          %v1085 = vld [vmem:[%s6 + $0x18] sm:$0xff]
          %v1086 = vld [vmem:[%s7] sm:$0xff]
          %v1087 = vld [vmem:[%s7 + $0x8] sm:$0xff]
          %v1088 = vld [vmem:[%s7 + $0x10] sm:$0xff]
          %v1089 = vld [vmem:[%s7 + $0x18] sm:$0xff]
          %v1090 = vld [vmem:[%s7 + $0x20] sm:$0xff]
          %v1091 = vld [vmem:[%s7 + $0x28] sm:$0xff]
          %v1092 = vld [vmem:[%s7 + $0x30] sm:$0xff]
          %v1093 = vld [vmem:[%s7 + $0x38] sm:$0xff]
          %1094 = vmatpush.msra.mxu0 0.0
          %1095 = vmatpush.msra.mxu0 0.0
          %1096 = vmatpush.msra.mxu0 0.0
          %1097 = vmatpush.msra.mxu0 0.0
          %1098 = vmatpush.msra.mxu0 0.0
          %1099 = vmatpush.msra.mxu0 0.0
          %1100 = vmatpush.msra.mxu0 0.0
          %1101 = vmatpush.msra.mxu0 0.0
          %1102 = vmatpush.msra.mxu0 %v1093
          %1103 = vmatpush.msra.mxu0 %v1092
          %1104 = vmatpush.msra.mxu0 %v1091
          %1105 = vmatpush.msra.mxu0 %v1090
          %1106 = vmatpush.msra.mxu0 %v1089
          %1107 = vmatpush.msra.mxu0 %v1088
          %1108 = vmatpush.msra.mxu0 %v1087
          %1109 = vmatpush.msra.mxu0 %v1086
          %1110 = vmatmul.f32.gmra.mxu0 %v804
          %v1111 = vpop.f32.mrf.mxu0
          %v1112 = vadd.f32 0.0, %v1111
          %1113 = vmatmul.f32.gmra.mxu0 %v807
          %v1114 = vpop.f32.mrf.mxu0
          %v1115 = vadd.f32 0.0, %v1114
          %1116 = vmatmul.f32.gmra.mxu0 %v810
          %v1117 = vpop.f32.mrf.mxu0
          %v1118 = vadd.f32 0.0, %v1117
          %1119 = vmatmul.f32.gmra.mxu0 %v813
          %v1120 = vpop.f32.mrf.mxu0
          %v1121 = vadd.f32 0.0, %v1120
          %1122 = vmatmul.f32.gmra.mxu0 %v816
          %v1123 = vpop.f32.mrf.mxu0
          %v1124 = vadd.f32 0.0, %v1123
          %1125 = vmatmul.f32.gmra.mxu0 %v819
          %v1126 = vpop.f32.mrf.mxu0
          %v1127 = vadd.f32 0.0, %v1126
          %1128 = vmatmul.f32.gmra.mxu0 %v822
          %v1129 = vpop.f32.mrf.mxu0
          %v1130 = vadd.f32 0.0, %v1129
          %1131 = vmatmul.f32.gmra.mxu0 %v825
          %v1132 = vpop.f32.mrf.mxu0
          %v1133 = vadd.f32 0.0, %v1132
          %1134 = vmatmul.f32.gmra.mxu0 %v828
          %v1135 = vpop.f32.mrf.mxu0
          %v1136 = vadd.f32 0.0, %v1135
          %1137 = vmatmul.f32.gmra.mxu0 %v831
          %v1138 = vpop.f32.mrf.mxu0
          %v1139 = vadd.f32 0.0, %v1138
          %1140 = vmatmul.f32.gmra.mxu0 %v834
          %v1141 = vpop.f32.mrf.mxu0
          %v1142 = vadd.f32 0.0, %v1141
          %1143 = vmatmul.f32.gmra.mxu0 %v837
          %v1144 = vpop.f32.mrf.mxu0
          %v1145 = vadd.f32 0.0, %v1144
          %1146 = vmatmul.f32.gmra.mxu0 %v840
          %v1147 = vpop.f32.mrf.mxu0
          %v1148 = vadd.f32 0.0, %v1147
          %1149 = vmatmul.f32.gmra.mxu0 %v843
          %v1150 = vpop.f32.mrf.mxu0
          %v1151 = vadd.f32 0.0, %v1150
          %1152 = vmatmul.f32.gmra.mxu0 %v846
          %v1153 = vpop.f32.mrf.mxu0
          %v1154 = vadd.f32 0.0, %v1153
          %1155 = vmatmul.f32.gmra.mxu0 %v849
          %v1156 = vpop.f32.mrf.mxu0
          %v1157 = vadd.f32 0.0, %v1156
          %1158 = vdwg.mxu0
          %v1160 = vsel %vm916, %v1050, 0
          %v1163 = vsel %vm916, %v1051, 0
          %v1166 = vsel %vm916, %v1052, 0
          %v1169 = vsel %vm916, %v1053, 0
          %v1172 = vsel %vm916, %v1054, 0
          %v1175 = vsel %vm916, %v1055, 0
          %v1178 = vsel %vm916, %v1056, 0
          %v1181 = vsel %vm916, %v1057, 0
          %v1184 = vsel %vm916, %v1058, 0
          %v1187 = vsel %vm916, %v1059, 0
          %v1190 = vsel %vm916, %v1060, 0
          %v1193 = vsel %vm916, %v1061, 0
          %v1196 = vsel %vm916, %v1062, 0
          %v1199 = vsel %vm916, %v1063, 0
          %v1202 = vsel %vm916, %v1064, 0
          %v1205 = vsel %vm916, %v1065, 0
          %1207 = vmatpush.msra.mxu0 0.0
          %1208 = vmatpush.msra.mxu0 0.0
          %1209 = vmatpush.msra.mxu0 0.0
          %1210 = vmatpush.msra.mxu0 0.0
          %1211 = vmatpush.msra.mxu0 0.0
          %1212 = vmatpush.msra.mxu0 0.0
          %1213 = vmatpush.msra.mxu0 0.0
          %1214 = vmatpush.msra.mxu0 0.0
          %1215 = vmatpush.msra.mxu0 0.0
          %1216 = vmatpush.msra.mxu0 0.0
          %1217 = vmatpush.msra.mxu0 0.0
          %1218 = vmatpush.msra.mxu0 0.0
          %1219 = vmatpush.msra.mxu0 %v1085
          %1220 = vmatpush.msra.mxu0 %v1084
          %1221 = vmatpush.msra.mxu0 %v1083
          %1222 = vmatpush.msra.mxu0 %v1082
          %1223 = vmatmul.f32.gmra.mxu0 %v1160
          %v1224 = vpop.f32.mrf.mxu0
          %v1225 = vadd.f32 %v1112, %v1224
          %1226 = vmatmul.f32.gmra.mxu0 %v1163
          %v1227 = vpop.f32.mrf.mxu0
          %v1228 = vadd.f32 %v1115, %v1227
          %1229 = vmatmul.f32.gmra.mxu0 %v1166
          %v1230 = vpop.f32.mrf.mxu0
          %v1231 = vadd.f32 %v1118, %v1230
          %1232 = vmatmul.f32.gmra.mxu0 %v1169
          %v1233 = vpop.f32.mrf.mxu0
          %v1234 = vadd.f32 %v1121, %v1233
          %1235 = vmatmul.f32.gmra.mxu0 %v1172
          %v1236 = vpop.f32.mrf.mxu0
          %v1237 = vadd.f32 %v1124, %v1236
          %1238 = vmatmul.f32.gmra.mxu0 %v1175
          %v1239 = vpop.f32.mrf.mxu0
          %v1240 = vadd.f32 %v1127, %v1239
          %1241 = vmatmul.f32.gmra.mxu0 %v1178
          %v1242 = vpop.f32.mrf.mxu0
          %v1243 = vadd.f32 %v1130, %v1242
          %1244 = vmatmul.f32.gmra.mxu0 %v1181
          %v1245 = vpop.f32.mrf.mxu0
          %v1246 = vadd.f32 %v1133, %v1245
          %1247 = vmatmul.f32.gmra.mxu0 %v1184
          %v1248 = vpop.f32.mrf.mxu0
          %v1249 = vadd.f32 %v1136, %v1248
          %1250 = vmatmul.f32.gmra.mxu0 %v1187
          %v1251 = vpop.f32.mrf.mxu0
          %v1252 = vadd.f32 %v1139, %v1251
          %1253 = vmatmul.f32.gmra.mxu0 %v1190
          %v1254 = vpop.f32.mrf.mxu0
          %v1255 = vadd.f32 %v1142, %v1254
          %1256 = vmatmul.f32.gmra.mxu0 %v1193
          %v1257 = vpop.f32.mrf.mxu0
          %v1258 = vadd.f32 %v1145, %v1257
          %1259 = vmatmul.f32.gmra.mxu0 %v1196
          %v1260 = vpop.f32.mrf.mxu0
          %v1261 = vadd.f32 %v1148, %v1260
          %1262 = vmatmul.f32.gmra.mxu0 %v1199
          %v1263 = vpop.f32.mrf.mxu0
          %v1264 = vadd.f32 %v1151, %v1263
          %1265 = vmatmul.f32.gmra.mxu0 %v1202
          %v1266 = vpop.f32.mrf.mxu0
          %v1267 = vadd.f32 %v1154, %v1266
          %1268 = vmatmul.f32.gmra.mxu0 %v1205
          %v1269 = vpop.f32.mrf.mxu0
          %v1270 = vadd.f32 %v1157, %v1269
          %1271 = vdwg.mxu0
          %v1272 = vld [vmem:[%s8] sm:$0x1]
          %v1274 = vperm.slane %v1272, 0
          %v1276 = vadd.f32 %v1225, %v1274
          %v1277 = vadd.f32 %v1228, %v1274
          %v1278 = vadd.f32 %v1231, %v1274
          %v1279 = vadd.f32 %v1234, %v1274
          %v1280 = vadd.f32 %v1237, %v1274
          %v1281 = vadd.f32 %v1240, %v1274
          %v1282 = vadd.f32 %v1243, %v1274
          %v1283 = vadd.f32 %v1246, %v1274
          %v1284 = vadd.f32 %v1249, %v1274
          %v1285 = vadd.f32 %v1252, %v1274
          %v1286 = vadd.f32 %v1255, %v1274
          %v1287 = vadd.f32 %v1258, %v1274
          %v1288 = vadd.f32 %v1261, %v1274
          %v1289 = vadd.f32 %v1264, %v1274
          %v1290 = vadd.f32 %v1267, %v1274
          %v1291 = vadd.f32 %v1270, %v1274
          %v1292 = vxor.u32 %v1276, 2147483648
          %v1293 = vxor.u32 %v1277, 2147483648
          %v1294 = vxor.u32 %v1278, 2147483648
          %v1295 = vxor.u32 %v1279, 2147483648
          %v1296 = vxor.u32 %v1280, 2147483648
          %v1297 = vxor.u32 %v1281, 2147483648
          %v1298 = vxor.u32 %v1282, 2147483648
          %v1299 = vxor.u32 %v1283, 2147483648
          %v1300 = vxor.u32 %v1284, 2147483648
          %v1301 = vxor.u32 %v1285, 2147483648
          %v1302 = vxor.u32 %v1286, 2147483648
          %v1303 = vxor.u32 %v1287, 2147483648
          %v1304 = vxor.u32 %v1288, 2147483648
          %v1305 = vxor.u32 %v1289, 2147483648
          %v1306 = vxor.u32 %v1290, 2147483648
          %v1307 = vxor.u32 %v1291, 2147483648
          %v1308 = vmul.f32 %v1292, 1.442695
          %v1309 = vpow.pop %v1308
          %v1310 = vmul.f32 %v1293, 1.442695
          %v1311 = vpow.pop %v1310
          %v1312 = vmul.f32 %v1294, 1.442695
          %v1313 = vpow.pop %v1312
          %v1314 = vmul.f32 %v1295, 1.442695
          %v1315 = vpow.pop %v1314
          %v1316 = vmul.f32 %v1296, 1.442695
          %v1317 = vpow.pop %v1316
          %v1318 = vmul.f32 %v1297, 1.442695
          %v1319 = vpow.pop %v1318
          %v1320 = vmul.f32 %v1298, 1.442695
          %v1321 = vpow.pop %v1320
          %v1322 = vmul.f32 %v1299, 1.442695
          %v1323 = vpow.pop %v1322
          %v1324 = vmul.f32 %v1300, 1.442695
          %v1325 = vpow.pop %v1324
          %v1326 = vmul.f32 %v1301, 1.442695
          %v1327 = vpow.pop %v1326
          %v1328 = vmul.f32 %v1302, 1.442695
          %v1329 = vpow.pop %v1328
          %v1330 = vmul.f32 %v1303, 1.442695
          %v1331 = vpow.pop %v1330
          %v1332 = vmul.f32 %v1304, 1.442695
          %v1333 = vpow.pop %v1332
          %v1334 = vmul.f32 %v1305, 1.442695
          %v1335 = vpow.pop %v1334
          %v1336 = vmul.f32 %v1306, 1.442695
          %v1337 = vpow.pop %v1336
          %v1338 = vmul.f32 %v1307, 1.442695
          %v1339 = vpow.pop %v1338
          %v1340 = vadd.f32 %v1309, 1.0
          %v1341 = vadd.f32 %v1311, 1.0
          %v1342 = vadd.f32 %v1313, 1.0
          %v1343 = vadd.f32 %v1315, 1.0
          %v1344 = vadd.f32 %v1317, 1.0
          %v1345 = vadd.f32 %v1319, 1.0
          %v1346 = vadd.f32 %v1321, 1.0
          %v1347 = vadd.f32 %v1323, 1.0
          %v1348 = vadd.f32 %v1325, 1.0
          %v1349 = vadd.f32 %v1327, 1.0
          %v1350 = vadd.f32 %v1329, 1.0
          %v1351 = vadd.f32 %v1331, 1.0
          %v1352 = vadd.f32 %v1333, 1.0
          %v1353 = vadd.f32 %v1335, 1.0
          %v1354 = vadd.f32 %v1337, 1.0
          %v1355 = vadd.f32 %v1339, 1.0
          %v1356 = vrcp.pop %v1340
          %v1357 = vmul.f32 %v1340, %v1356
          %v1358 = vsub.f32 1.0, %v1357
          %v1359 = vmul.f32 %v1356, %v1358
          %v1360 = vadd.f32 %v1356, %v1359
          %vm1361 = vweird.f32 %v1340
          %vm1362 = vweird.f32 %v1356
          %vm1363 = vmor %vm1361, %vm1362
          %v1364 = vsel %vm1363, %v1356, %v1360
          %v1365 = vand.u32 2147483647, %v1340
          %vm1366 = vcmp.eq.f32.partialorder %v1365, 8.507059e+37
          %v1367 = vand.u32 %v1340, 2147483648
          %v1368 = vor.u32 1.1754944e-38, %v1367
          %v1369 = vsel %vm1366, %v1368, %v1364
          %v1370 = vmul.f32 1.0, %v1369
          %v1371 = vrcp.pop %v1341
          %v1372 = vmul.f32 %v1341, %v1371
          %v1373 = vsub.f32 1.0, %v1372
          %v1374 = vmul.f32 %v1371, %v1373
          %v1375 = vadd.f32 %v1371, %v1374
          %vm1376 = vweird.f32 %v1341
          %vm1377 = vweird.f32 %v1371
          %vm1378 = vmor %vm1376, %vm1377
          %v1379 = vsel %vm1378, %v1371, %v1375
          %v1380 = vand.u32 2147483647, %v1341
          %vm1381 = vcmp.eq.f32.partialorder %v1380, 8.507059e+37
          %v1382 = vand.u32 %v1341, 2147483648
          %v1383 = vor.u32 1.1754944e-38, %v1382
          %v1384 = vsel %vm1381, %v1383, %v1379
          %v1385 = vmul.f32 1.0, %v1384
          %v1386 = vrcp.pop %v1342
          %v1387 = vmul.f32 %v1342, %v1386
          %v1388 = vsub.f32 1.0, %v1387
          %v1389 = vmul.f32 %v1386, %v1388
          %v1390 = vadd.f32 %v1386, %v1389
          %vm1391 = vweird.f32 %v1342
          %vm1392 = vweird.f32 %v1386
          %vm1393 = vmor %vm1391, %vm1392
          %v1394 = vsel %vm1393, %v1386, %v1390
          %v1395 = vand.u32 2147483647, %v1342
          %vm1396 = vcmp.eq.f32.partialorder %v1395, 8.507059e+37
          %v1397 = vand.u32 %v1342, 2147483648
          %v1398 = vor.u32 1.1754944e-38, %v1397
          %v1399 = vsel %vm1396, %v1398, %v1394
          %v1400 = vmul.f32 1.0, %v1399
          %v1401 = vrcp.pop %v1343
          %v1402 = vmul.f32 %v1343, %v1401
          %v1403 = vsub.f32 1.0, %v1402
          %v1404 = vmul.f32 %v1401, %v1403
          %v1405 = vadd.f32 %v1401, %v1404
          %vm1406 = vweird.f32 %v1343
          %vm1407 = vweird.f32 %v1401
          %vm1408 = vmor %vm1406, %vm1407
          %v1409 = vsel %vm1408, %v1401, %v1405
          %v1410 = vand.u32 2147483647, %v1343
          %vm1411 = vcmp.eq.f32.partialorder %v1410, 8.507059e+37
          %v1412 = vand.u32 %v1343, 2147483648
          %v1413 = vor.u32 1.1754944e-38, %v1412
          %v1414 = vsel %vm1411, %v1413, %v1409
          %v1415 = vmul.f32 1.0, %v1414
          %v1416 = vrcp.pop %v1344
          %v1417 = vmul.f32 %v1344, %v1416
          %v1418 = vsub.f32 1.0, %v1417
          %v1419 = vmul.f32 %v1416, %v1418
          %v1420 = vadd.f32 %v1416, %v1419
          %vm1421 = vweird.f32 %v1344
          %vm1422 = vweird.f32 %v1416
          %vm1423 = vmor %vm1421, %vm1422
          %v1424 = vsel %vm1423, %v1416, %v1420
          %v1425 = vand.u32 2147483647, %v1344
          %vm1426 = vcmp.eq.f32.partialorder %v1425, 8.507059e+37
          %v1427 = vand.u32 %v1344, 2147483648
          %v1428 = vor.u32 1.1754944e-38, %v1427
          %v1429 = vsel %vm1426, %v1428, %v1424
          %v1430 = vmul.f32 1.0, %v1429
          %v1431 = vrcp.pop %v1345
          %v1432 = vmul.f32 %v1345, %v1431
          %v1433 = vsub.f32 1.0, %v1432
          %v1434 = vmul.f32 %v1431, %v1433
          %v1435 = vadd.f32 %v1431, %v1434
          %vm1436 = vweird.f32 %v1345
          %vm1437 = vweird.f32 %v1431
          %vm1438 = vmor %vm1436, %vm1437
          %v1439 = vsel %vm1438, %v1431, %v1435
          %v1440 = vand.u32 2147483647, %v1345
          %vm1441 = vcmp.eq.f32.partialorder %v1440, 8.507059e+37
          %v1442 = vand.u32 %v1345, 2147483648
          %v1443 = vor.u32 1.1754944e-38, %v1442
          %v1444 = vsel %vm1441, %v1443, %v1439
          %v1445 = vmul.f32 1.0, %v1444
          %v1446 = vrcp.pop %v1346
          %v1447 = vmul.f32 %v1346, %v1446
          %v1448 = vsub.f32 1.0, %v1447
          %v1449 = vmul.f32 %v1446, %v1448
          %v1450 = vadd.f32 %v1446, %v1449
          %vm1451 = vweird.f32 %v1346
          %vm1452 = vweird.f32 %v1446
          %vm1453 = vmor %vm1451, %vm1452
          %v1454 = vsel %vm1453, %v1446, %v1450
          %v1455 = vand.u32 2147483647, %v1346
          %vm1456 = vcmp.eq.f32.partialorder %v1455, 8.507059e+37
          %v1457 = vand.u32 %v1346, 2147483648
          %v1458 = vor.u32 1.1754944e-38, %v1457
          %v1459 = vsel %vm1456, %v1458, %v1454
          %v1460 = vmul.f32 1.0, %v1459
          %v1461 = vrcp.pop %v1347
          %v1462 = vmul.f32 %v1347, %v1461
          %v1463 = vsub.f32 1.0, %v1462
          %v1464 = vmul.f32 %v1461, %v1463
          %v1465 = vadd.f32 %v1461, %v1464
          %vm1466 = vweird.f32 %v1347
          %vm1467 = vweird.f32 %v1461
          %vm1468 = vmor %vm1466, %vm1467
          %v1469 = vsel %vm1468, %v1461, %v1465
          %v1470 = vand.u32 2147483647, %v1347
          %vm1471 = vcmp.eq.f32.partialorder %v1470, 8.507059e+37
          %v1472 = vand.u32 %v1347, 2147483648
          %v1473 = vor.u32 1.1754944e-38, %v1472
          %v1474 = vsel %vm1471, %v1473, %v1469
          %v1475 = vmul.f32 1.0, %v1474
          %v1476 = vrcp.pop %v1348
          %v1477 = vmul.f32 %v1348, %v1476
          %v1478 = vsub.f32 1.0, %v1477
          %v1479 = vmul.f32 %v1476, %v1478
          %v1480 = vadd.f32 %v1476, %v1479
          %vm1481 = vweird.f32 %v1348
          %vm1482 = vweird.f32 %v1476
          %vm1483 = vmor %vm1481, %vm1482
          %v1484 = vsel %vm1483, %v1476, %v1480
          %v1485 = vand.u32 2147483647, %v1348
          %vm1486 = vcmp.eq.f32.partialorder %v1485, 8.507059e+37
          %v1487 = vand.u32 %v1348, 2147483648
          %v1488 = vor.u32 1.1754944e-38, %v1487
          %v1489 = vsel %vm1486, %v1488, %v1484
          %v1490 = vmul.f32 1.0, %v1489
          %v1491 = vrcp.pop %v1349
          %v1492 = vmul.f32 %v1349, %v1491
          %v1493 = vsub.f32 1.0, %v1492
          %v1494 = vmul.f32 %v1491, %v1493
          %v1495 = vadd.f32 %v1491, %v1494
          %vm1496 = vweird.f32 %v1349
          %vm1497 = vweird.f32 %v1491
          %vm1498 = vmor %vm1496, %vm1497
          %v1499 = vsel %vm1498, %v1491, %v1495
          %v1500 = vand.u32 2147483647, %v1349
          %vm1501 = vcmp.eq.f32.partialorder %v1500, 8.507059e+37
          %v1502 = vand.u32 %v1349, 2147483648
          %v1503 = vor.u32 1.1754944e-38, %v1502
          %v1504 = vsel %vm1501, %v1503, %v1499
          %v1505 = vmul.f32 1.0, %v1504
          %v1506 = vrcp.pop %v1350
          %v1507 = vmul.f32 %v1350, %v1506
          %v1508 = vsub.f32 1.0, %v1507
          %v1509 = vmul.f32 %v1506, %v1508
          %v1510 = vadd.f32 %v1506, %v1509
          %vm1511 = vweird.f32 %v1350
          %vm1512 = vweird.f32 %v1506
          %vm1513 = vmor %vm1511, %vm1512
          %v1514 = vsel %vm1513, %v1506, %v1510
          %v1515 = vand.u32 2147483647, %v1350
          %vm1516 = vcmp.eq.f32.partialorder %v1515, 8.507059e+37
          %v1517 = vand.u32 %v1350, 2147483648
          %v1518 = vor.u32 1.1754944e-38, %v1517
          %v1519 = vsel %vm1516, %v1518, %v1514
          %v1520 = vmul.f32 1.0, %v1519
          %v1521 = vrcp.pop %v1351
          %v1522 = vmul.f32 %v1351, %v1521
          %v1523 = vsub.f32 1.0, %v1522
          %v1524 = vmul.f32 %v1521, %v1523
          %v1525 = vadd.f32 %v1521, %v1524
          %vm1526 = vweird.f32 %v1351
          %vm1527 = vweird.f32 %v1521
          %vm1528 = vmor %vm1526, %vm1527
          %v1529 = vsel %vm1528, %v1521, %v1525
          %v1530 = vand.u32 2147483647, %v1351
          %vm1531 = vcmp.eq.f32.partialorder %v1530, 8.507059e+37
          %v1532 = vand.u32 %v1351, 2147483648
          %v1533 = vor.u32 1.1754944e-38, %v1532
          %v1534 = vsel %vm1531, %v1533, %v1529
          %v1535 = vmul.f32 1.0, %v1534
          %v1536 = vrcp.pop %v1352
          %v1537 = vmul.f32 %v1352, %v1536
          %v1538 = vsub.f32 1.0, %v1537
          %v1539 = vmul.f32 %v1536, %v1538
          %v1540 = vadd.f32 %v1536, %v1539
          %vm1541 = vweird.f32 %v1352
          %vm1542 = vweird.f32 %v1536
          %vm1543 = vmor %vm1541, %vm1542
          %v1544 = vsel %vm1543, %v1536, %v1540
          %v1545 = vand.u32 2147483647, %v1352
          %vm1546 = vcmp.eq.f32.partialorder %v1545, 8.507059e+37
          %v1547 = vand.u32 %v1352, 2147483648
          %v1548 = vor.u32 1.1754944e-38, %v1547
          %v1549 = vsel %vm1546, %v1548, %v1544
          %v1550 = vmul.f32 1.0, %v1549
          %v1551 = vrcp.pop %v1353
          %v1552 = vmul.f32 %v1353, %v1551
          %v1553 = vsub.f32 1.0, %v1552
          %v1554 = vmul.f32 %v1551, %v1553
          %v1555 = vadd.f32 %v1551, %v1554
          %vm1556 = vweird.f32 %v1353
          %vm1557 = vweird.f32 %v1551
          %vm1558 = vmor %vm1556, %vm1557
          %v1559 = vsel %vm1558, %v1551, %v1555
          %v1560 = vand.u32 2147483647, %v1353
          %vm1561 = vcmp.eq.f32.partialorder %v1560, 8.507059e+37
          %v1562 = vand.u32 %v1353, 2147483648
          %v1563 = vor.u32 1.1754944e-38, %v1562
          %v1564 = vsel %vm1561, %v1563, %v1559
          %v1565 = vmul.f32 1.0, %v1564
          %v1566 = vrcp.pop %v1354
          %v1567 = vmul.f32 %v1354, %v1566
          %v1568 = vsub.f32 1.0, %v1567
          %v1569 = vmul.f32 %v1566, %v1568
          %v1570 = vadd.f32 %v1566, %v1569
          %vm1571 = vweird.f32 %v1354
          %vm1572 = vweird.f32 %v1566
          %vm1573 = vmor %vm1571, %vm1572
          %v1574 = vsel %vm1573, %v1566, %v1570
          %v1575 = vand.u32 2147483647, %v1354
          %vm1576 = vcmp.eq.f32.partialorder %v1575, 8.507059e+37
          %v1577 = vand.u32 %v1354, 2147483648
          %v1578 = vor.u32 1.1754944e-38, %v1577
          %v1579 = vsel %vm1576, %v1578, %v1574
          %v1580 = vmul.f32 1.0, %v1579
          %v1581 = vrcp.pop %v1355
          %v1582 = vmul.f32 %v1355, %v1581
          %v1583 = vsub.f32 1.0, %v1582
          %v1584 = vmul.f32 %v1581, %v1583
          %v1585 = vadd.f32 %v1581, %v1584
          %vm1586 = vweird.f32 %v1355
          %vm1587 = vweird.f32 %v1581
          %vm1588 = vmor %vm1586, %vm1587
          %v1589 = vsel %vm1588, %v1581, %v1585
          %v1590 = vand.u32 2147483647, %v1355
          %vm1591 = vcmp.eq.f32.partialorder %v1590, 8.507059e+37
          %v1592 = vand.u32 %v1355, 2147483648
          %v1593 = vor.u32 1.1754944e-38, %v1592
          %v1594 = vsel %vm1591, %v1593, %v1589
          %v1595 = vmul.f32 1.0, %v1594
          %vm1596 = vcmask 64512
          %1597 = vst.msk [vmem:[%s538] sm:$0xff] %vm1596, %v1370
          %1598 = vst.msk [vmem:[%s538 + $0x8] sm:$0xff] %vm1596, %v1385
          %1599 = vst.msk [vmem:[%s538 + $0x10] sm:$0xff] %vm1596, %v1400
          %1600 = vst.msk [vmem:[%s538 + $0x18] sm:$0xff] %vm1596, %v1415
          %1601 = vst.msk [vmem:[%s538 + $0x20] sm:$0xff] %vm1596, %v1430
          %1602 = vst.msk [vmem:[%s538 + $0x28] sm:$0xff] %vm1596, %v1445
          %1603 = vst.msk [vmem:[%s538 + $0x30] sm:$0xff] %vm1596, %v1460
          %1604 = vst.msk [vmem:[%s538 + $0x38] sm:$0xff] %vm1596, %v1475
          %1605 = vst.msk [vmem:[%s538 + $0x40] sm:$0xff] %vm1596, %v1490
          %1606 = vst.msk [vmem:[%s538 + $0x48] sm:$0xff] %vm1596, %v1505
          %1607 = vst.msk [vmem:[%s538 + $0x50] sm:$0xff] %vm1596, %v1520
          %1608 = vst.msk [vmem:[%s538 + $0x58] sm:$0xff] %vm1596, %v1535
          %1609 = vst.msk [vmem:[%s538 + $0x60] sm:$0xff] %vm1596, %v1550
          %1610 = vst.msk [vmem:[%s538 + $0x68] sm:$0xff] %vm1596, %v1565
          %1611 = vst.msk [vmem:[%s538 + $0x70] sm:$0xff] %vm1596, %v1580
          %1612 = vst.msk [vmem:[%s538 + $0x78] sm:$0xff] %vm1596, %v1595
        $region105: #{_forward_impl.3} parent=92 // pred_fallthru
          _
        %s1613 = smul.u32 16, %s26
        %p1614 = scmp.lt.s32.totalorder %s1613, 31
        %s1615 = scalar_select %p1614, %s1613, 31
        %s1616 = smul.addr %s1615, 8
        %s1617 = scalar_lea.vmem %s9, %s1616
        %s1618 = smul.u32 16, %s26
        %p1619 = scmp.lt.s32.totalorder %s1618, 31
        %s1620 = scalar_select %p1619, %s1618, 31
        %s1621 = smul.addr %s1620, 8
        %s1622 = scalar_lea.vmem %s10, %s1621
        // Predicated region
        $region106: #{_forward_impl.3} parent=92 // pred_check
          %p1623 = pneg %p258
        $region107: #{_forward_impl.3} parent=92 // pred_check_branch
          %1625 = sbr.rel (%p1623) target = $region109
        $region108: #{_forward_impl.3} parent=92 // pred_region
          %s1626 = smul.u32 16, %s26
        $region109: #{_forward_impl.3} parent=92 // pred_fallthru
          _
        // Predicated region
        $region110: #{_forward_impl.3} parent=92 // pred_check
          %p1627 = pneg %p284
        $region111: #{_forward_impl.3} parent=92 // pred_check_branch
          %1629 = sbr.rel (%p1627) target = $region113
        $region112: #{_forward_impl.3} parent=92 // pred_region
          %s1630 = smul.u32 16, %s26
        $region113: #{_forward_impl.3} parent=92 // pred_fallthru
          _
      $region93: #{_forward_impl.3} parent=5 // pred_fallthru
        _
      %p1631 = scmp.le.s32.totalorder 2, %s17
      // Predicated region
      $region114: #{_forward_impl.3} parent=5 // pred_check
        %p1632 = pneg %p1631
      $region115: #{_forward_impl.3} parent=5 // pred_check_branch
        %1634 = sbr.rel (%p1632) target = $region117
      $region116: #{_forward_impl.3} parent=5 // pred_region
        %s1635 = ssub.s32 %s17, 2
        // Predicated region
        $region118: #{_forward_impl.3} parent=116 // pred_check
          %p1636 = pneg %p264
        $region119: #{_forward_impl.3} parent=116 // pred_check_branch
          %1638 = sbr.rel (%p1636) target = $region121
        $region120: #{_forward_impl.3} parent=116 // pred_region
          %s1639 = smul.u32 16, %s28
          %p1640 = scmp.lt.s32.totalorder %s1639, 31
          %s1641 = scalar_select %p1640, %s1639, 31
          %s1642 = smul.addr %s1641, 8
          %s1643 = scalar_lea.vmem %s9, %s1642
        $region121: #{_forward_impl.3} parent=116 // pred_fallthru
          _
        // Predicated region
        $region122: #{_forward_impl.3} parent=116 // pred_check
          %p1644 = pneg %p290
        $region123: #{_forward_impl.3} parent=116 // pred_check_branch
          %1646 = sbr.rel (%p1644) target = $region125
        $region124: #{_forward_impl.3} parent=116 // pred_region
          %s1647 = smul.u32 16, %s28
          %p1648 = scmp.lt.s32.totalorder %s1647, 31
          %s1649 = scalar_select %p1648, %s1647, 31
          %s1650 = smul.addr %s1649, 8
          %s1651 = scalar_lea.vmem %s10, %s1650
        $region125: #{_forward_impl.3} parent=116 // pred_fallthru
          _
      $region117: #{_forward_impl.3} parent=5 // pred_fallthru
        _
    $region6: #{_forward_impl.3} parent=1 // loop_footer
      %s21 = sadd.s32 1, %s17
    $region7: #{_forward_impl.3} parent=1 // loop_footer_branch
      %16 = sbr.rel target = $region3
    $region8: #{_forward_impl.3} parent=1 // loop_exit
      _

// kernel: _forward_impl.2
$region0: #{_forward_impl.2}
  #allocation0 [shape = 'u32[]', space=smem, size = 0x4, offset = 0x4, fixed_abs, tag = 'smem constant byte address 0x4 - core index']
  #allocation1 [shape = 'u32[72,128]{1,0:T(1,128)}', space=vmem, size = 0x9000, scoped, tag = 'internal scratch']
  #allocation2 [shape = 'f32[128,32]{1,0:T(8,128)}', space=vmem, size = 0x10000, scoped, tag = 'scratch operand']
  %s0 = inlined_call_operand.vmem [shape: f32[256,32], index: 0, kind: input, shape index: {}]
  %s1 = inlined_call_operand.vmem [shape: bf16[256,256], index: 1, kind: input, shape index: {}]
  %s2 = inlined_call_operand.vmem [shape: f32[256,32], index: 2, kind: input, shape index: {}]
  %s3 = inlined_call_operand.vmem [shape: f32[32,32], index: 3, kind: input, shape index: {}]
  %s4 = inlined_call_operand.vmem [shape: f32[32,32], index: 4, kind: input, shape index: {}]
  %s5 = inlined_call_operand.vmem [shape: f32[1,32], index: 5, kind: input, shape index: {}]
  %s6 = inlined_call_operand.vmem [shape: f32[256,32], index: 6, kind: output, shape index: {}]
  %s7 = sld [smem:[#allocation0]]
  $region106: #{_forward_impl.2} parent=0
    _
  %s9 = ssub.s32 1, %s7
  %s10 = scalar_select 0, %s9, %s7
  $region1: #{_forward_impl.2} parent=0
    #allocation3 [shape = 'u8[65536]{0}', space=vmem, size = 0x10000, scoped, tag = 'input window, operand 1']
    loop: start=0, step=1, limit=6
    $region2: #{_forward_impl.2} parent=1 // loop_pre_header
      _
    $region3: #{_forward_impl.2} parent=1 // loop_header
      %s12 = sphi 0, %s16
      %p13 = scmp.ge.s32.totalorder %s12, 6
      %s19 = sphi 0, %s31
      %s20 = sphi 0, %s27
      %s21 = sphi 0, %s19
      %s22 = sphi 0, %s20
      %s23 = sphi 0, %s21
      %s24 = sphi 0, %s22
      %s34 = sphi 0, %s36
      %s37 = sphi 0, %s34
      %s38 = sphi 0, %s37
      %s54 = sphi 0, %s38
      %s62 = sphi 0, %s64
      %s65 = sphi 0, %s62
      %s66 = sphi 0, %s65
      %s82 = sphi 0, %s66
      %s88 = sphi 0, %s90
      %s91 = sphi 0, %s88
      %s92 = sphi 0, %s91
      %s108 = sphi 0, %s92
      %s112 = sphi 0, %s112
      %s114 = sphi 0, %s112
      %s115 = sphi 0, %s114
      %s129 = sphi 0, %s115
      %s133 = sphi 0, %s133
      %s135 = sphi 0, %s133
      %s136 = sphi 0, %s135
      %s150 = sphi 0, %s136
      %s154 = sphi 0, %s154
      %s156 = sphi 0, %s154
      %s157 = sphi 0, %s156
      %s171 = sphi 0, %s157
      %s177 = sphi 0, %s179
      %s180 = sphi 0, %s177
      %s181 = sphi 0, %s180
      %s197 = sphi 0, %s181
    $region4: #{_forward_impl.2} parent=1 // loop_header_branch
      %15 = sbr.rel (%p13) target = $region8
    $region5: #{_forward_impl.2} parent=1 // loop_body
      %s17 = ssub.s32 %s12, 1
      %s18 = ssub.s32 %s12, 2
      %s25 = sadd.s32 1, %s20
      %p26 = scmp.ge.s32.totalorder %s25, 2
      %s27 = scalar_select %p26, 0, %s25
      %s28 = sadd.s32 1, %s19
      %s29 = scalar_select %p26, %s28, %s19
      %p30 = scmp.ge.s32.totalorder %s29, 2
      %s31 = scalar_select %p30, 0, %s29
      %s32 = ssub.s32 %s19, %s31
      %p33 = scmp.eq.s32.totalorder %s32, 0
      %s35 = sadd.s32 %s34, 1
      %s36 = scalar_select %p33, %s34, %s35
      %p39 = pneg %p33
      %p40 = scmp.eq.s32.totalorder %s12, 3
      %p41 = por %p39, %p40
      %p42 = scmp.ne.s32.totalorder %s34, %s37
      %p43 = scmp.eq.s32.totalorder %s12, 0
      %p44 = por %p42, %p43
      %p45 = scmp.ne.s32.totalorder %s34, %s37
      %p46 = scmp.eq.s32.totalorder %s17, 3
      %p47 = por %p45, %p46
      %p48 = scmp.ne.s32.totalorder %s37, %s38
      %p49 = scmp.eq.s32.totalorder %s17, 0
      %p50 = por %p48, %p49
      %p51 = scmp.ne.s32.totalorder %s37, %s38
      %p52 = scmp.eq.s32.totalorder %s18, 3
      %p53 = por %p51, %p52
      %p55 = scmp.ne.s32.totalorder %s38, %s54
      %p56 = scmp.eq.s32.totalorder %s18, 0
      %p57 = por %p55, %p56
      %s58 = ssub.s32 %s19, %s31
      %s59 = ssub.s32 %s20, %s27
      %s60 = sor.u32 %s58, %s59
      %p61 = scmp.eq.s32.totalorder %s60, 0
      %s63 = sadd.s32 %s62, 1
      %s64 = scalar_select %p61, %s62, %s63
      %p67 = pneg %p61
      %p68 = scmp.eq.s32.totalorder %s12, 3
      %p69 = por %p67, %p68
      %p70 = scmp.ne.s32.totalorder %s62, %s65
      %p71 = scmp.eq.s32.totalorder %s12, 0
      %p72 = por %p70, %p71
      %p73 = scmp.ne.s32.totalorder %s62, %s65
      %p74 = scmp.eq.s32.totalorder %s17, 3
      %p75 = por %p73, %p74
      %p76 = scmp.ne.s32.totalorder %s65, %s66
      %p77 = scmp.eq.s32.totalorder %s17, 0
      %p78 = por %p76, %p77
      %p79 = scmp.ne.s32.totalorder %s65, %s66
      %p80 = scmp.eq.s32.totalorder %s18, 3
      %p81 = por %p79, %p80
      %p83 = scmp.ne.s32.totalorder %s66, %s82
      %p84 = scmp.eq.s32.totalorder %s18, 0
      %p85 = por %p83, %p84
      %s86 = ssub.s32 %s20, %s27
      %p87 = scmp.eq.s32.totalorder %s86, 0
      %s89 = sadd.s32 %s88, 1
      %s90 = scalar_select %p87, %s88, %s89
      %p93 = pneg %p87
      %p94 = scmp.eq.s32.totalorder %s12, 3
      %p95 = por %p93, %p94
      %p96 = scmp.ne.s32.totalorder %s88, %s91
      %p97 = scmp.eq.s32.totalorder %s12, 0
      %p98 = por %p96, %p97
      %p99 = scmp.ne.s32.totalorder %s88, %s91
      %p100 = scmp.eq.s32.totalorder %s17, 3
      %p101 = por %p99, %p100
      %p102 = scmp.ne.s32.totalorder %s91, %s92
      %p103 = scmp.eq.s32.totalorder %s17, 0
      %p104 = por %p102, %p103
      %p105 = scmp.ne.s32.totalorder %s91, %s92
      %p106 = scmp.eq.s32.totalorder %s18, 3
      %p107 = por %p105, %p106
      %p109 = scmp.ne.s32.totalorder %s92, %s108
      %p110 = scmp.eq.s32.totalorder %s18, 0
      %p111 = por %p109, %p110
      %s113 = sadd.s32 %s112, 1
      %p116 = scmp.eq.s32.totalorder %s12, 3
      %p117 = scmp.ne.s32.totalorder %s112, %s114
      %p118 = scmp.eq.s32.totalorder %s12, 0
      %p119 = por %p117, %p118
      %p120 = scmp.ne.s32.totalorder %s112, %s114
      %p121 = scmp.eq.s32.totalorder %s17, 3
      %p122 = por %p120, %p121
      %p123 = scmp.ne.s32.totalorder %s114, %s115
      %p124 = scmp.eq.s32.totalorder %s17, 0
      %p125 = por %p123, %p124
      %p126 = scmp.ne.s32.totalorder %s114, %s115
      %p127 = scmp.eq.s32.totalorder %s18, 3
      %p128 = por %p126, %p127
      %p130 = scmp.ne.s32.totalorder %s115, %s129
      %p131 = scmp.eq.s32.totalorder %s18, 0
      %p132 = por %p130, %p131
      %s134 = sadd.s32 %s133, 1
      %p137 = scmp.eq.s32.totalorder %s12, 3
      %p138 = scmp.ne.s32.totalorder %s133, %s135
      %p139 = scmp.eq.s32.totalorder %s12, 0
      %p140 = por %p138, %p139
      %p141 = scmp.ne.s32.totalorder %s133, %s135
      %p142 = scmp.eq.s32.totalorder %s17, 3
      %p143 = por %p141, %p142
      %p144 = scmp.ne.s32.totalorder %s135, %s136
      %p145 = scmp.eq.s32.totalorder %s17, 0
      %p146 = por %p144, %p145
      %p147 = scmp.ne.s32.totalorder %s135, %s136
      %p148 = scmp.eq.s32.totalorder %s18, 3
      %p149 = por %p147, %p148
      %p151 = scmp.ne.s32.totalorder %s136, %s150
      %p152 = scmp.eq.s32.totalorder %s18, 0
      %p153 = por %p151, %p152
      %s155 = sadd.s32 %s154, 1
      %p158 = scmp.eq.s32.totalorder %s12, 3
      %p159 = scmp.ne.s32.totalorder %s154, %s156
      %p160 = scmp.eq.s32.totalorder %s12, 0
      %p161 = por %p159, %p160
      %p162 = scmp.ne.s32.totalorder %s154, %s156
      %p163 = scmp.eq.s32.totalorder %s17, 3
      %p164 = por %p162, %p163
      %p165 = scmp.ne.s32.totalorder %s156, %s157
      %p166 = scmp.eq.s32.totalorder %s17, 0
      %p167 = por %p165, %p166
      %p168 = scmp.ne.s32.totalorder %s156, %s157
      %p169 = scmp.eq.s32.totalorder %s18, 3
      %p170 = por %p168, %p169
      %p172 = scmp.ne.s32.totalorder %s157, %s171
      %p173 = scmp.eq.s32.totalorder %s18, 0
      %p174 = por %p172, %p173
      %s175 = ssub.s32 %s19, %s31
      %p176 = scmp.eq.s32.totalorder %s175, 0
      %s178 = sadd.s32 %s177, 1
      %s179 = scalar_select %p176, %s177, %s178
      %p182 = pneg %p176
      %p183 = scmp.eq.s32.totalorder %s12, 3
      %p184 = por %p182, %p183
      %p185 = scmp.ne.s32.totalorder %s177, %s180
      %p186 = scmp.eq.s32.totalorder %s12, 0
      %p187 = por %p185, %p186
      %p188 = scmp.ne.s32.totalorder %s177, %s180
      %p189 = scmp.eq.s32.totalorder %s17, 3
      %p190 = por %p188, %p189
      %p191 = scmp.ne.s32.totalorder %s180, %s181
      %p192 = scmp.eq.s32.totalorder %s17, 0
      %p193 = por %p191, %p192
      %p194 = scmp.ne.s32.totalorder %s180, %s181
      %p195 = scmp.eq.s32.totalorder %s18, 3
      %p196 = por %p194, %p195
      %p198 = scmp.ne.s32.totalorder %s181, %s197
      %p199 = scmp.eq.s32.totalorder %s18, 0
      %p200 = por %p198, %p199
      %p201 = scmp.le.s32.totalorder 1, %s12
      %p202 = scmp.lt.s32.totalorder %s12, 5
      %p203 = pnand %p201, %p202
      %p204 = pneg %p203
      // Predicated region
      $region9: #{_forward_impl.2} parent=5 // pred_check
        _
      $region10: #{_forward_impl.2} parent=5 // pred_check_branch
        %206 = sbr.rel (%p203) target = $region12
      $region11: #{_forward_impl.2} parent=5 // pred_region
        %s207 = ssub.s32 %s12, 1
        // Predicated region
        $region13: #{_forward_impl.2} parent=11 // pred_check
          %p208 = pneg %p125
        $region14: #{_forward_impl.2} parent=11 // pred_check_branch
          %210 = sbr.rel (%p208) target = $region16
        $region15: #{_forward_impl.2} parent=11 // pred_region
          _
        $region16: #{_forward_impl.2} parent=11 // pred_fallthru
          _
        // Predicated region
        $region17: #{_forward_impl.2} parent=11 // pred_check
          %p211 = pneg %p146
        $region18: #{_forward_impl.2} parent=11 // pred_check_branch
          %213 = sbr.rel (%p211) target = $region20
        $region19: #{_forward_impl.2} parent=11 // pred_region
          _
        $region20: #{_forward_impl.2} parent=11 // pred_fallthru
          _
        // Predicated region
        $region21: #{_forward_impl.2} parent=11 // pred_check
          %p214 = pneg %p167
        $region22: #{_forward_impl.2} parent=11 // pred_check_branch
          %216 = sbr.rel (%p214) target = $region24
        $region23: #{_forward_impl.2} parent=11 // pred_region
          _
        $region24: #{_forward_impl.2} parent=11 // pred_fallthru
          _
      $region12: #{_forward_impl.2} parent=5 // pred_fallthru
        _
      %p217 = scmp.lt.s32.totalorder %s12, 4
      // Predicated region
      $region25: #{_forward_impl.2} parent=5 // pred_check
        %p218 = pneg %p217
      $region26: #{_forward_impl.2} parent=5 // pred_check_branch
        %220 = sbr.rel (%p218) target = $region28
      $region27: #{_forward_impl.2} parent=5 // pred_region
        // Predicated region
        $region29: #{_forward_impl.2} parent=27 // pred_check
          %p221 = pneg %p44
        $region30: #{_forward_impl.2} parent=27 // pred_check_branch
          %223 = sbr.rel (%p221) target = $region32
        $region31: #{_forward_impl.2} parent=27 // pred_region
          %s224 = smul.u32 16, %s19
          %p225 = scmp.lt.s32.totalorder %s224, 31
          %s226 = scalar_select %p225, %s224, 31
          %s227 = smul.addr %s226, 8
          %s228 = scalar_lea.vmem %s0, %s227
          %s229 = smul.u32 16, %s19
        $region32: #{_forward_impl.2} parent=27 // pred_fallthru
          _
        // Predicated region
        $region33: #{_forward_impl.2} parent=27 // pred_check
          %p230 = pneg %p72
        $region34: #{_forward_impl.2} parent=27 // pred_check_branch
          %232 = sbr.rel (%p230) target = $region36
        $region35: #{_forward_impl.2} parent=27 // pred_region
          %s233 = sand.u32 %s62, 1
          %s234 = sand.u32 %s62, 1
          %s235 = smul.addr %s234, 64
          %s236 = scalar_lea.vmem [#allocation3], %s235
          %s237 = smul.u32 16, %s19
          %s238 = smul.addr %s237, 2
          %s239 = sadd.s32 %s20, %s238
          %s240 = smul.addr %s239, 4
          %s241 = scalar_lea.vmem %s1, %s240
          // Predicated region
          $region37: #{_forward_impl.2} parent=35 // pred_check
            _
          $region38: #{_forward_impl.2} parent=35 // pred_check_branch
            %243 = sbr.rel (0) target = $region40
          $region39: #{_forward_impl.2} parent=35 // pred_region
            // Predicated region
            $region41: #{_forward_impl.2} parent=39 // pred_check
              _
            $region42: #{_forward_impl.2} parent=39 // pred_check_branch
              %245 = sbr.rel target = $region44
            $region43: #{_forward_impl.2} parent=39 // pred_region
              // Predicated region
              $region56: #{_forward_impl.2} parent=43 // pred_check
                _
              $region57: #{_forward_impl.2} parent=43 // pred_check_branch
                %291 = sbr.rel (0) target = $region59
              $region58: #{_forward_impl.2} parent=43 // pred_region
                loop: start=0, step=1, limit=1
                $region60: #{_forward_impl.2} parent=58 // loop_pre_header
                  _
                $region61: #{_forward_impl.2} parent=58 // loop_header
                  %s293 = sphi 0, %s297
                  %p294 = scmp.ge.s32.totalorder %s293, 1
                  %s298 = sphi %s241, %s241
                  %s299 = sphi %s236, %s236
                $region62: #{_forward_impl.2} parent=58 // loop_header_branch
                  %296 = sbr.rel (%p294) target = $region66
                $region63: #{_forward_impl.2} parent=58 // loop_body
                  _
                $region64: #{_forward_impl.2} parent=58 // loop_footer
                  %s297 = sadd.s32 1, %s293
                $region65: #{_forward_impl.2} parent=58 // loop_footer_branch
                  %292 = sbr.rel target = $region61
                $region66: #{_forward_impl.2} parent=58 // loop_exit
                  _
                %s301 = ssub.s32 16, 1
                loop: start=0, step=1, limit=1
                $region67: #{_forward_impl.2} parent=58 // loop_pre_header
                  _
                $region68: #{_forward_impl.2} parent=58 // loop_header
                  %s303 = sphi 0, %s307
                  %p304 = scmp.ge.s32.totalorder %s303, 1
                  %s308 = sphi %s241, %s241
                  %s309 = sphi %s236, %s236
                $region69: #{_forward_impl.2} parent=58 // loop_header_branch
                  %306 = sbr.rel (%p304) target = $region73
                $region70: #{_forward_impl.2} parent=58 // loop_body
                  %v310 = vld [vmem:[%s308] sm:%s301]
                  %311 = vst [vmem:[%s309] sm:%s301] %v310
                  %v312 = vld [vmem:[%s308 + $0x8] sm:%s301]
                  %313 = vst [vmem:[%s309 + $0x4] sm:%s301] %v312
                  %v314 = vld [vmem:[%s308 + $0x10] sm:%s301]
                  %315 = vst [vmem:[%s309 + $0x8] sm:%s301] %v314
                  %v316 = vld [vmem:[%s308 + $0x18] sm:%s301]
                  %317 = vst [vmem:[%s309 + $0xc] sm:%s301] %v316
                  %v318 = vld [vmem:[%s308 + $0x20] sm:%s301]
                  %319 = vst [vmem:[%s309 + $0x10] sm:%s301] %v318
                  %v320 = vld [vmem:[%s308 + $0x28] sm:%s301]
                  %321 = vst [vmem:[%s309 + $0x14] sm:%s301] %v320
                  %v322 = vld [vmem:[%s308 + $0x30] sm:%s301]
                  %323 = vst [vmem:[%s309 + $0x18] sm:%s301] %v322
                  %v324 = vld [vmem:[%s308 + $0x38] sm:%s301]
                  %325 = vst [vmem:[%s309 + $0x1c] sm:%s301] %v324
                  %v326 = vld [vmem:[%s308 + $0x40] sm:%s301]
                  %327 = vst [vmem:[%s309 + $0x20] sm:%s301] %v326
                  %v328 = vld [vmem:[%s308 + $0x48] sm:%s301]
                  %329 = vst [vmem:[%s309 + $0x24] sm:%s301] %v328
                  %v330 = vld [vmem:[%s308 + $0x50] sm:%s301]
                  %331 = vst [vmem:[%s309 + $0x28] sm:%s301] %v330
                  %v332 = vld [vmem:[%s308 + $0x58] sm:%s301]
                  %333 = vst [vmem:[%s309 + $0x2c] sm:%s301] %v332
                  %v334 = vld [vmem:[%s308 + $0x60] sm:%s301]
                  %335 = vst [vmem:[%s309 + $0x30] sm:%s301] %v334
                  %v336 = vld [vmem:[%s308 + $0x68] sm:%s301]
                  %337 = vst [vmem:[%s309 + $0x34] sm:%s301] %v336
                  %v338 = vld [vmem:[%s308 + $0x70] sm:%s301]
                  %339 = vst [vmem:[%s309 + $0x38] sm:%s301] %v338
                  %v340 = vld [vmem:[%s308 + $0x78] sm:%s301]
                  %341 = vst [vmem:[%s309 + $0x3c] sm:%s301] %v340
                $region71: #{_forward_impl.2} parent=58 // loop_footer
                  %s307 = sadd.s32 1, %s303
                $region72: #{_forward_impl.2} parent=58 // loop_footer_branch
                  %302 = sbr.rel target = $region68
                $region73: #{_forward_impl.2} parent=58 // loop_exit
                  _
              $region59: #{_forward_impl.2} parent=43 // pred_fallthru
                _
            $region44: #{_forward_impl.2} parent=39 // pred_fallthru
              _
            // Predicated region
            $region45: #{_forward_impl.2} parent=39 // pred_check
              _
            $region46: #{_forward_impl.2} parent=39 // pred_check_branch
              %247 = sbr.rel (0) target = $region48
            $region47: #{_forward_impl.2} parent=39 // pred_region
              %s249 = ssub.s32 16, 1
              loop: start=0, step=1, limit=1
              $region49: #{_forward_impl.2} parent=47 // loop_pre_header
                _
              $region50: #{_forward_impl.2} parent=47 // loop_header
                %s251 = sphi 0, %s255
                %p252 = scmp.ge.s32.totalorder %s251, 1
                %s256 = sphi %s241, %s241
                %s257 = sphi %s236, %s236
              $region51: #{_forward_impl.2} parent=47 // loop_header_branch
                %254 = sbr.rel (%p252) target = $region55
              $region52: #{_forward_impl.2} parent=47 // loop_body
                %v258 = vld [vmem:[%s256] sm:%s249]
                %259 = vst [vmem:[%s257] sm:%s249] %v258
                %v260 = vld [vmem:[%s256 + $0x8] sm:%s249]
                %261 = vst [vmem:[%s257 + $0x4] sm:%s249] %v260
                %v262 = vld [vmem:[%s256 + $0x10] sm:%s249]
                %263 = vst [vmem:[%s257 + $0x8] sm:%s249] %v262
                %v264 = vld [vmem:[%s256 + $0x18] sm:%s249]
                %265 = vst [vmem:[%s257 + $0xc] sm:%s249] %v264
                %v266 = vld [vmem:[%s256 + $0x20] sm:%s249]
                %267 = vst [vmem:[%s257 + $0x10] sm:%s249] %v266
                %v268 = vld [vmem:[%s256 + $0x28] sm:%s249]
                %269 = vst [vmem:[%s257 + $0x14] sm:%s249] %v268
                %v270 = vld [vmem:[%s256 + $0x30] sm:%s249]
                %271 = vst [vmem:[%s257 + $0x18] sm:%s249] %v270
                %v272 = vld [vmem:[%s256 + $0x38] sm:%s249]
                %273 = vst [vmem:[%s257 + $0x1c] sm:%s249] %v272
                %v274 = vld [vmem:[%s256 + $0x40] sm:%s249]
                %275 = vst [vmem:[%s257 + $0x20] sm:%s249] %v274
                %v276 = vld [vmem:[%s256 + $0x48] sm:%s249]
                %277 = vst [vmem:[%s257 + $0x24] sm:%s249] %v276
                %v278 = vld [vmem:[%s256 + $0x50] sm:%s249]
                %279 = vst [vmem:[%s257 + $0x28] sm:%s249] %v278
                %v280 = vld [vmem:[%s256 + $0x58] sm:%s249]
                %281 = vst [vmem:[%s257 + $0x2c] sm:%s249] %v280
                %v282 = vld [vmem:[%s256 + $0x60] sm:%s249]
                %283 = vst [vmem:[%s257 + $0x30] sm:%s249] %v282
                %v284 = vld [vmem:[%s256 + $0x68] sm:%s249]
                %285 = vst [vmem:[%s257 + $0x34] sm:%s249] %v284
                %v286 = vld [vmem:[%s256 + $0x70] sm:%s249]
                %287 = vst [vmem:[%s257 + $0x38] sm:%s249] %v286
                %v288 = vld [vmem:[%s256 + $0x78] sm:%s249]
                %289 = vst [vmem:[%s257 + $0x3c] sm:%s249] %v288
              $region53: #{_forward_impl.2} parent=47 // loop_footer
                %s255 = sadd.s32 1, %s251
              $region54: #{_forward_impl.2} parent=47 // loop_footer_branch
                %250 = sbr.rel target = $region50
              $region55: #{_forward_impl.2} parent=47 // loop_exit
                _
            $region48: #{_forward_impl.2} parent=39 // pred_fallthru
              _
          $region40: #{_forward_impl.2} parent=35 // pred_fallthru
            _
          %342 = vnop
        $region36: #{_forward_impl.2} parent=27 // pred_fallthru
          _
        // Predicated region
        $region74: #{_forward_impl.2} parent=27 // pred_check
          %p343 = pneg %p98
        $region75: #{_forward_impl.2} parent=27 // pred_check_branch
          %345 = sbr.rel (%p343) target = $region77
        $region76: #{_forward_impl.2} parent=27 // pred_region
          %s346 = smul.u32 16, %s20
          %p347 = scmp.lt.s32.totalorder %s346, 31
          %s348 = scalar_select %p347, %s346, 31
          %s349 = smul.addr %s348, 8
          %s350 = scalar_lea.vmem %s2, %s349
          %s351 = smul.u32 16, %s20
        $region77: #{_forward_impl.2} parent=27 // pred_fallthru
          _
      $region28: #{_forward_impl.2} parent=5 // pred_fallthru
        _
      %p352 = scmp.le.s32.totalorder 1, %s12
      %p353 = scmp.lt.s32.totalorder %s12, 5
      %p354 = pnand %p352, %p353
      %p355 = pneg %p354
      // Predicated region
      $region78: #{_forward_impl.2} parent=5 // pred_check
        _
      $region79: #{_forward_impl.2} parent=5 // pred_check_branch
        %357 = sbr.rel (%p354) target = $region81
      $region80: #{_forward_impl.2} parent=5 // pred_region
        %s358 = ssub.s32 %s12, 1
        %s359 = sand.u32 %s65, 1
        %s360 = sand.u32 %s65, 1
        %s361 = smul.addr %s360, 64
        %s362 = scalar_lea.vmem [#allocation3], %s361
        // Predicated region
        $region82: #{_forward_impl.2} parent=80 // pred_check
          %p363 = pneg %p78
        $region83: #{_forward_impl.2} parent=80 // pred_check_branch
          %365 = sbr.rel (%p363) target = $region85
        $region84: #{_forward_impl.2} parent=80 // pred_region
          _
        $region85: #{_forward_impl.2} parent=80 // pred_fallthru
          _
        %s366 = smul.u32 16, %s21
        %p367 = scmp.lt.s32.totalorder %s366, 31
        %s368 = scalar_select %p367, %s366, 31
        %s369 = smul.addr %s368, 8
        %s370 = scalar_lea.vmem %s0, %s369
        %p371 = pneg %p50
        %p372 = pneg %p47
        %s373 = sand.u32 %s65, 1
        %s374 = sand.u32 %s65, 1
        %s375 = smul.addr %s374, 64
        %s376 = scalar_lea.vmem [#allocation3], %s375
        %p377 = pneg %p78
        %p378 = pneg %p75
        %s379 = smul.u32 16, %s22
        %p380 = scmp.lt.s32.totalorder %s379, 31
        %s381 = scalar_select %p380, %s379, 31
        %s382 = smul.addr %s381, 8
        %s383 = scalar_lea.vmem %s2, %s382
        %p384 = pneg %p104
        %p385 = pneg %p101
        %p386 = pneg %p125
        %p387 = pneg %p122
        %p388 = pneg %p146
        %p389 = pneg %p143
        %p390 = pneg %p167
        %p391 = pneg %p164
        %p392 = pneg %p193
        %p393 = pneg %p190
        %s394 = smul.u32 16, %s21
        %p395 = scmp.lt.s32.totalorder %s394, 31
        %s396 = scalar_select %p395, %s394, 31
        %s397 = smul.addr %s396, 8
        %s398 = scalar_lea.vmem %s6, %s397
        %s399 = smul.u32 16, %s21
        %p400 = scmp.lt.s32.totalorder %s399, 31
        %s401 = scalar_select %p400, %s399, 31
        %s402 = smul.addr %s401, 8
        %s403 = scalar_lea.vmem %s0, %s402
        %s404 = smul.u32 16, %s21
        %s405 = smul.u32 16, %s21
        %s406 = smul.u32 16, %s22
        %p407 = scmp.lt.s32.totalorder %s406, 31
        %s408 = scalar_select %p407, %s406, 31
        %s409 = smul.addr %s408, 8
        %s410 = scalar_lea.vmem %s2, %s409
        %s411 = smul.u32 16, %s22
        %s412 = smul.u32 16, %s21
        %p413 = scmp.lt.s32.totalorder %s412, 31
        %s414 = scalar_select %p413, %s412, 31
        %s415 = smul.addr %s414, 8
        %s416 = scalar_lea.vmem %s6, %s415
        %s417 = smul.u32 16, %s21
        %p418 = scmp.eq.s32.totalorder %s22, 0
        // Predicated region
        $region86: #{_forward_impl.2} parent=80 // pred_check
          %p419 = pneg %p418
        $region87: #{_forward_impl.2} parent=80 // pred_check_branch
          %421 = sbr.rel (%p419) target = $region89
        $region88: #{_forward_impl.2} parent=80 // pred_region
          %vm422 = vcmask 261120
          %423 = vst.msk [vmem:[#allocation2] sm:$0xff] %vm422, 0.0
          %424 = vst.msk [vmem:[#allocation2 + $0x8] sm:$0xff] %vm422, 0.0
          %425 = vst.msk [vmem:[#allocation2 + $0x10] sm:$0xff] %vm422, 0.0
          %426 = vst.msk [vmem:[#allocation2 + $0x18] sm:$0xff] %vm422, 0.0
          %427 = vst.msk [vmem:[#allocation2 + $0x20] sm:$0xff] %vm422, 0.0
          %428 = vst.msk [vmem:[#allocation2 + $0x28] sm:$0xff] %vm422, 0.0
          %429 = vst.msk [vmem:[#allocation2 + $0x30] sm:$0xff] %vm422, 0.0
          %430 = vst.msk [vmem:[#allocation2 + $0x38] sm:$0xff] %vm422, 0.0
          %431 = vst.msk [vmem:[#allocation2 + $0x40] sm:$0xff] %vm422, 0.0
          %432 = vst.msk [vmem:[#allocation2 + $0x48] sm:$0xff] %vm422, 0.0
          %433 = vst.msk [vmem:[#allocation2 + $0x50] sm:$0xff] %vm422, 0.0
          %434 = vst.msk [vmem:[#allocation2 + $0x58] sm:$0xff] %vm422, 0.0
          %435 = vst.msk [vmem:[#allocation2 + $0x60] sm:$0xff] %vm422, 0.0
          %436 = vst.msk [vmem:[#allocation2 + $0x68] sm:$0xff] %vm422, 0.0
          %437 = vst.msk [vmem:[#allocation2 + $0x70] sm:$0xff] %vm422, 0.0
          %438 = vst.msk [vmem:[#allocation2 + $0x78] sm:$0xff] %vm422, 0.0
        $region89: #{_forward_impl.2} parent=80 // pred_fallthru
          _
        %v439 = vld [vmem:[%s362] sm:$0xf]
        %v440 = vld [vmem:[%s362 + $0x4] sm:$0xf]
        %v441 = vld [vmem:[%s362 + $0x8] sm:$0xf]
        %v442 = vld [vmem:[%s362 + $0xc] sm:$0xf]
        %v443 = vld [vmem:[%s362 + $0x10] sm:$0xf]
        %v444 = vld [vmem:[%s362 + $0x14] sm:$0xf]
        %v445 = vld [vmem:[%s362 + $0x18] sm:$0xf]
        %v446 = vld [vmem:[%s362 + $0x1c] sm:$0xf]
        %v447 = vld [vmem:[%s362 + $0x20] sm:$0xf]
        %v448 = vld [vmem:[%s362 + $0x24] sm:$0xf]
        %v449 = vld [vmem:[%s362 + $0x28] sm:$0xf]
        %v450 = vld [vmem:[%s362 + $0x2c] sm:$0xf]
        %v451 = vld [vmem:[%s362 + $0x30] sm:$0xf]
        %v452 = vld [vmem:[%s362 + $0x34] sm:$0xf]
        %v453 = vld [vmem:[%s362 + $0x38] sm:$0xf]
        %v454 = vld [vmem:[%s362 + $0x3c] sm:$0xf]
        %v455 = vunpack.c.l.bf16 %v439
        %v456 = vunpack.c.l.bf16 %v440
        %v457 = vunpack.c.l.bf16 %v441
        %v458 = vunpack.c.l.bf16 %v442
        %v459 = vunpack.c.l.bf16 %v443
        %v460 = vunpack.c.l.bf16 %v444
        %v461 = vunpack.c.l.bf16 %v445
        %v462 = vunpack.c.l.bf16 %v446
        %v463 = vunpack.c.l.bf16 %v447
        %v464 = vunpack.c.l.bf16 %v448
        %v465 = vunpack.c.l.bf16 %v449
        %v466 = vunpack.c.l.bf16 %v450
        %v467 = vunpack.c.l.bf16 %v451
        %v468 = vunpack.c.l.bf16 %v452
        %v469 = vunpack.c.l.bf16 %v453
        %v470 = vunpack.c.l.bf16 %v454
        %v471 = vld [vmem:[#allocation2] sm:$0xff]
        %v472 = vld [vmem:[#allocation2 + $0x8] sm:$0xff]
        %v473 = vld [vmem:[#allocation2 + $0x10] sm:$0xff]
        %v474 = vld [vmem:[#allocation2 + $0x18] sm:$0xff]
        %v475 = vld [vmem:[#allocation2 + $0x20] sm:$0xff]
        %v476 = vld [vmem:[#allocation2 + $0x28] sm:$0xff]
        %v477 = vld [vmem:[#allocation2 + $0x30] sm:$0xff]
        %v478 = vld [vmem:[#allocation2 + $0x38] sm:$0xff]
        %v479 = vld [vmem:[#allocation2 + $0x40] sm:$0xff]
        %v480 = vld [vmem:[#allocation2 + $0x48] sm:$0xff]
        %v481 = vld [vmem:[#allocation2 + $0x50] sm:$0xff]
        %v482 = vld [vmem:[#allocation2 + $0x58] sm:$0xff]
        %v483 = vld [vmem:[#allocation2 + $0x60] sm:$0xff]
        %v484 = vld [vmem:[#allocation2 + $0x68] sm:$0xff]
        %v485 = vld [vmem:[#allocation2 + $0x70] sm:$0xff]
        %v486 = vld [vmem:[#allocation2 + $0x78] sm:$0xff]
        %v487 = vld [vmem:[%s410] sm:$0xff]
        %v488 = vld [vmem:[%s410 + $0x8] sm:$0xff]
        %v489 = vld [vmem:[%s410 + $0x10] sm:$0xff]
        %v490 = vld [vmem:[%s410 + $0x18] sm:$0xff]
        %v491 = vld [vmem:[%s410 + $0x20] sm:$0xff]
        %v492 = vld [vmem:[%s410 + $0x28] sm:$0xff]
        %v493 = vld [vmem:[%s410 + $0x30] sm:$0xff]
        %v494 = vld [vmem:[%s410 + $0x38] sm:$0xff]
        %v495 = vld [vmem:[%s410 + $0x40] sm:$0xff]
        %v496 = vld [vmem:[%s410 + $0x48] sm:$0xff]
        %v497 = vld [vmem:[%s410 + $0x50] sm:$0xff]
        %v498 = vld [vmem:[%s410 + $0x58] sm:$0xff]
        %v499 = vld [vmem:[%s410 + $0x60] sm:$0xff]
        %v500 = vld [vmem:[%s410 + $0x68] sm:$0xff]
        %v501 = vld [vmem:[%s410 + $0x70] sm:$0xff]
        %v502 = vld [vmem:[%s410 + $0x78] sm:$0xff]
        %503 = vmatpush.msra.mxu0 %v502
        %504 = vmatpush.msra.mxu0 %v501
        %505 = vmatpush.msra.mxu0 %v500
        %506 = vmatpush.msra.mxu0 %v499
        %507 = vmatpush.msra.mxu0 %v498
        %508 = vmatpush.msra.mxu0 %v497
        %509 = vmatpush.msra.mxu0 %v496
        %510 = vmatpush.msra.mxu0 %v495
        %511 = vmatpush.msra.mxu0 %v494
        %512 = vmatpush.msra.mxu0 %v493
        %513 = vmatpush.msra.mxu0 %v492
        %514 = vmatpush.msra.mxu0 %v491
        %515 = vmatpush.msra.mxu0 %v490
        %516 = vmatpush.msra.mxu0 %v489
        %517 = vmatpush.msra.mxu0 %v488
        %518 = vmatpush.msra.mxu0 %v487
        %519 = vmatmul.f32.gmra.mxu0 %v455
        %v520 = vpop.f32.mrf.mxu0
        %v521 = vadd.f32 0.0, %v520
        %522 = vmatmul.f32.gmra.mxu0 %v456
        %v523 = vpop.f32.mrf.mxu0
        %v524 = vadd.f32 0.0, %v523
        %525 = vmatmul.f32.gmra.mxu0 %v457
        %v526 = vpop.f32.mrf.mxu0
        %v527 = vadd.f32 0.0, %v526
        %528 = vmatmul.f32.gmra.mxu0 %v458
        %v529 = vpop.f32.mrf.mxu0
        %v530 = vadd.f32 0.0, %v529
        %531 = vmatmul.f32.gmra.mxu0 %v459
        %v532 = vpop.f32.mrf.mxu0
        %v533 = vadd.f32 0.0, %v532
        %534 = vmatmul.f32.gmra.mxu0 %v460
        %v535 = vpop.f32.mrf.mxu0
        %v536 = vadd.f32 0.0, %v535
        %537 = vmatmul.f32.gmra.mxu0 %v461
        %v538 = vpop.f32.mrf.mxu0
        %v539 = vadd.f32 0.0, %v538
        %540 = vmatmul.f32.gmra.mxu0 %v462
        %v541 = vpop.f32.mrf.mxu0
        %v542 = vadd.f32 0.0, %v541
        %543 = vmatmul.f32.gmra.mxu0 %v463
        %v544 = vpop.f32.mrf.mxu0
        %v545 = vadd.f32 0.0, %v544
        %546 = vmatmul.f32.gmra.mxu0 %v464
        %v547 = vpop.f32.mrf.mxu0
        %v548 = vadd.f32 0.0, %v547
        %549 = vmatmul.f32.gmra.mxu0 %v465
        %v550 = vpop.f32.mrf.mxu0
        %v551 = vadd.f32 0.0, %v550
        %552 = vmatmul.f32.gmra.mxu0 %v466
        %v553 = vpop.f32.mrf.mxu0
        %v554 = vadd.f32 0.0, %v553
        %555 = vmatmul.f32.gmra.mxu0 %v467
        %v556 = vpop.f32.mrf.mxu0
        %v557 = vadd.f32 0.0, %v556
        %558 = vmatmul.f32.gmra.mxu0 %v468
        %v559 = vpop.f32.mrf.mxu0
        %v560 = vadd.f32 0.0, %v559
        %561 = vmatmul.f32.gmra.mxu0 %v469
        %v562 = vpop.f32.mrf.mxu0
        %v563 = vadd.f32 0.0, %v562
        %564 = vmatmul.f32.gmra.mxu0 %v470
        %v565 = vpop.f32.mrf.mxu0
        %v566 = vadd.f32 0.0, %v565
        %567 = vdwg.mxu0
        %v568 = vadd.f32 %v471, %v521
        %v569 = vadd.f32 %v472, %v524
        %v570 = vadd.f32 %v473, %v527
        %v571 = vadd.f32 %v474, %v530
        %v572 = vadd.f32 %v475, %v533
        %v573 = vadd.f32 %v476, %v536
        %v574 = vadd.f32 %v477, %v539
        %v575 = vadd.f32 %v478, %v542
        %v576 = vadd.f32 %v479, %v545
        %v577 = vadd.f32 %v480, %v548
        %v578 = vadd.f32 %v481, %v551
        %v579 = vadd.f32 %v482, %v554
        %v580 = vadd.f32 %v483, %v557
        %v581 = vadd.f32 %v484, %v560
        %v582 = vadd.f32 %v485, %v563
        %v583 = vadd.f32 %v486, %v566
        %vm584 = vcmask 261120
        %585 = vst.msk [vmem:[#allocation2] sm:$0xff] %vm584, %v568
        %586 = vst.msk [vmem:[#allocation2 + $0x8] sm:$0xff] %vm584, %v569
        %587 = vst.msk [vmem:[#allocation2 + $0x10] sm:$0xff] %vm584, %v570
        %588 = vst.msk [vmem:[#allocation2 + $0x18] sm:$0xff] %vm584, %v571
        %589 = vst.msk [vmem:[#allocation2 + $0x20] sm:$0xff] %vm584, %v572
        %590 = vst.msk [vmem:[#allocation2 + $0x28] sm:$0xff] %vm584, %v573
        %591 = vst.msk [vmem:[#allocation2 + $0x30] sm:$0xff] %vm584, %v574
        %592 = vst.msk [vmem:[#allocation2 + $0x38] sm:$0xff] %vm584, %v575
        %593 = vst.msk [vmem:[#allocation2 + $0x40] sm:$0xff] %vm584, %v576
        %594 = vst.msk [vmem:[#allocation2 + $0x48] sm:$0xff] %vm584, %v577
        %595 = vst.msk [vmem:[#allocation2 + $0x50] sm:$0xff] %vm584, %v578
        %596 = vst.msk [vmem:[#allocation2 + $0x58] sm:$0xff] %vm584, %v579
        %597 = vst.msk [vmem:[#allocation2 + $0x60] sm:$0xff] %vm584, %v580
        %598 = vst.msk [vmem:[#allocation2 + $0x68] sm:$0xff] %vm584, %v581
        %599 = vst.msk [vmem:[#allocation2 + $0x70] sm:$0xff] %vm584, %v582
        %600 = vst.msk [vmem:[#allocation2 + $0x78] sm:$0xff] %vm584, %v583
        %p601 = scmp.eq.s32.totalorder %s22, 1
        // Predicated region
        $region90: #{_forward_impl.2} parent=80 // pred_check
          %p602 = pneg %p601
        $region91: #{_forward_impl.2} parent=80 // pred_check_branch
          %604 = sbr.rel (%p602) target = $region93
        $region92: #{_forward_impl.2} parent=80 // pred_region
          %v605 = vld [vmem:[%s403] sm:$0xff]
          %v606 = vld [vmem:[%s403 + $0x8] sm:$0xff]
          %v607 = vld [vmem:[%s403 + $0x10] sm:$0xff]
          %v608 = vld [vmem:[%s403 + $0x18] sm:$0xff]
          %v609 = vld [vmem:[%s403 + $0x20] sm:$0xff]
          %v610 = vld [vmem:[%s403 + $0x28] sm:$0xff]
          %v611 = vld [vmem:[%s403 + $0x30] sm:$0xff]
          %v612 = vld [vmem:[%s403 + $0x38] sm:$0xff]
          %v613 = vld [vmem:[%s403 + $0x40] sm:$0xff]
          %v614 = vld [vmem:[%s403 + $0x48] sm:$0xff]
          %v615 = vld [vmem:[%s403 + $0x50] sm:$0xff]
          %v616 = vld [vmem:[%s403 + $0x58] sm:$0xff]
          %v617 = vld [vmem:[%s403 + $0x60] sm:$0xff]
          %v618 = vld [vmem:[%s403 + $0x68] sm:$0xff]
          %v619 = vld [vmem:[%s403 + $0x70] sm:$0xff]
          %v620 = vld [vmem:[%s403 + $0x78] sm:$0xff]
          %v621 = vld [vmem:[%s3] sm:$0xff]
          %v622 = vld [vmem:[%s3 + $0x8] sm:$0xff]
          %v623 = vld [vmem:[%s3 + $0x10] sm:$0xff]
          %v624 = vld [vmem:[%s3 + $0x18] sm:$0xff]
          %v625 = vld [vmem:[#allocation2] sm:$0xff]
          %v626 = vld [vmem:[#allocation2 + $0x8] sm:$0xff]
          %v627 = vld [vmem:[#allocation2 + $0x10] sm:$0xff]
          %v628 = vld [vmem:[#allocation2 + $0x18] sm:$0xff]
          %v629 = vld [vmem:[#allocation2 + $0x20] sm:$0xff]
          %v630 = vld [vmem:[#allocation2 + $0x28] sm:$0xff]
          %v631 = vld [vmem:[#allocation2 + $0x30] sm:$0xff]
          %v632 = vld [vmem:[#allocation2 + $0x38] sm:$0xff]
          %v633 = vld [vmem:[#allocation2 + $0x40] sm:$0xff]
          %v634 = vld [vmem:[#allocation2 + $0x48] sm:$0xff]
          %v635 = vld [vmem:[#allocation2 + $0x50] sm:$0xff]
          %v636 = vld [vmem:[#allocation2 + $0x58] sm:$0xff]
          %v637 = vld [vmem:[#allocation2 + $0x60] sm:$0xff]
          %v638 = vld [vmem:[#allocation2 + $0x68] sm:$0xff]
          %v639 = vld [vmem:[#allocation2 + $0x70] sm:$0xff]
          %v640 = vld [vmem:[#allocation2 + $0x78] sm:$0xff]
          %v641 = vld [vmem:[%s4] sm:$0xff]
          %v642 = vld [vmem:[%s4 + $0x8] sm:$0xff]
          %v643 = vld [vmem:[%s4 + $0x10] sm:$0xff]
          %v644 = vld [vmem:[%s4 + $0x18] sm:$0xff]
          %v646 = vsel %vm584, %v625, 0
          %v649 = vsel %vm584, %v626, 0
          %v652 = vsel %vm584, %v627, 0
          %v655 = vsel %vm584, %v628, 0
          %v658 = vsel %vm584, %v629, 0
          %v661 = vsel %vm584, %v630, 0
          %v664 = vsel %vm584, %v631, 0
          %v667 = vsel %vm584, %v632, 0
          %v670 = vsel %vm584, %v633, 0
          %v673 = vsel %vm584, %v634, 0
          %v676 = vsel %vm584, %v635, 0
          %v679 = vsel %vm584, %v636, 0
          %v682 = vsel %vm584, %v637, 0
          %v685 = vsel %vm584, %v638, 0
          %v688 = vsel %vm584, %v639, 0
          %v691 = vsel %vm584, %v640, 0
          %693 = vmatpush.msra.mxu0 0.0
          %694 = vmatpush.msra.mxu0 0.0
          %695 = vmatpush.msra.mxu0 0.0
          %696 = vmatpush.msra.mxu0 0.0
          %697 = vmatpush.msra.mxu0 0.0
          %698 = vmatpush.msra.mxu0 0.0
          %699 = vmatpush.msra.mxu0 0.0
          %700 = vmatpush.msra.mxu0 0.0
          %701 = vmatpush.msra.mxu0 0.0
          %702 = vmatpush.msra.mxu0 0.0
          %703 = vmatpush.msra.mxu0 0.0
          %704 = vmatpush.msra.mxu0 0.0
          %705 = vmatpush.msra.mxu0 %v644
          %706 = vmatpush.msra.mxu0 %v643
          %707 = vmatpush.msra.mxu0 %v642
          %708 = vmatpush.msra.mxu0 %v641
          %709 = vmatmul.f32.gmra.mxu0 %v646
          %v710 = vpop.f32.mrf.mxu0
          %v711 = vadd.f32 0.0, %v710
          %712 = vmatmul.f32.gmra.mxu0 %v649
          %v713 = vpop.f32.mrf.mxu0
          %v714 = vadd.f32 0.0, %v713
          %715 = vmatmul.f32.gmra.mxu0 %v652
          %v716 = vpop.f32.mrf.mxu0
          %v717 = vadd.f32 0.0, %v716
          %718 = vmatmul.f32.gmra.mxu0 %v655
          %v719 = vpop.f32.mrf.mxu0
          %v720 = vadd.f32 0.0, %v719
          %721 = vmatmul.f32.gmra.mxu0 %v658
          %v722 = vpop.f32.mrf.mxu0
          %v723 = vadd.f32 0.0, %v722
          %724 = vmatmul.f32.gmra.mxu0 %v661
          %v725 = vpop.f32.mrf.mxu0
          %v726 = vadd.f32 0.0, %v725
          %727 = vmatmul.f32.gmra.mxu0 %v664
          %v728 = vpop.f32.mrf.mxu0
          %v729 = vadd.f32 0.0, %v728
          %730 = vmatmul.f32.gmra.mxu0 %v667
          %v731 = vpop.f32.mrf.mxu0
          %v732 = vadd.f32 0.0, %v731
          %733 = vmatmul.f32.gmra.mxu0 %v670
          %v734 = vpop.f32.mrf.mxu0
          %v735 = vadd.f32 0.0, %v734
          %736 = vmatmul.f32.gmra.mxu0 %v673
          %v737 = vpop.f32.mrf.mxu0
          %v738 = vadd.f32 0.0, %v737
          %739 = vmatmul.f32.gmra.mxu0 %v676
          %v740 = vpop.f32.mrf.mxu0
          %v741 = vadd.f32 0.0, %v740
          %742 = vmatmul.f32.gmra.mxu0 %v679
          %v743 = vpop.f32.mrf.mxu0
          %v744 = vadd.f32 0.0, %v743
          %745 = vmatmul.f32.gmra.mxu0 %v682
          %v746 = vpop.f32.mrf.mxu0
          %v747 = vadd.f32 0.0, %v746
          %748 = vmatmul.f32.gmra.mxu0 %v685
          %v749 = vpop.f32.mrf.mxu0
          %v750 = vadd.f32 0.0, %v749
          %751 = vmatmul.f32.gmra.mxu0 %v688
          %v752 = vpop.f32.mrf.mxu0
          %v753 = vadd.f32 0.0, %v752
          %754 = vmatmul.f32.gmra.mxu0 %v691
          %v755 = vpop.f32.mrf.mxu0
          %v756 = vadd.f32 0.0, %v755
          %757 = vdwg.mxu0
          %v759 = vsel %vm584, %v605, 0
          %v762 = vsel %vm584, %v606, 0
          %v765 = vsel %vm584, %v607, 0
          %v768 = vsel %vm584, %v608, 0
          %v771 = vsel %vm584, %v609, 0
          %v774 = vsel %vm584, %v610, 0
          %v777 = vsel %vm584, %v611, 0
          %v780 = vsel %vm584, %v612, 0
          %v783 = vsel %vm584, %v613, 0
          %v786 = vsel %vm584, %v614, 0
          %v789 = vsel %vm584, %v615, 0
          %v792 = vsel %vm584, %v616, 0
          %v795 = vsel %vm584, %v617, 0
          %v798 = vsel %vm584, %v618, 0
          %v801 = vsel %vm584, %v619, 0
          %v804 = vsel %vm584, %v620, 0
          %806 = vmatpush.msra.mxu0 0.0
          %807 = vmatpush.msra.mxu0 0.0
          %808 = vmatpush.msra.mxu0 0.0
          %809 = vmatpush.msra.mxu0 0.0
          %810 = vmatpush.msra.mxu0 0.0
          %811 = vmatpush.msra.mxu0 0.0
          %812 = vmatpush.msra.mxu0 0.0
          %813 = vmatpush.msra.mxu0 0.0
          %814 = vmatpush.msra.mxu0 0.0
          %815 = vmatpush.msra.mxu0 0.0
          %816 = vmatpush.msra.mxu0 0.0
          %817 = vmatpush.msra.mxu0 0.0
          %818 = vmatpush.msra.mxu0 %v624
          %819 = vmatpush.msra.mxu0 %v623
          %820 = vmatpush.msra.mxu0 %v622
          %821 = vmatpush.msra.mxu0 %v621
          %822 = vmatmul.f32.gmra.mxu0 %v759
          %v823 = vpop.f32.mrf.mxu0
          %v824 = vadd.f32 %v711, %v823
          %825 = vmatmul.f32.gmra.mxu0 %v762
          %v826 = vpop.f32.mrf.mxu0
          %v827 = vadd.f32 %v714, %v826
          %828 = vmatmul.f32.gmra.mxu0 %v765
          %v829 = vpop.f32.mrf.mxu0
          %v830 = vadd.f32 %v717, %v829
          %831 = vmatmul.f32.gmra.mxu0 %v768
          %v832 = vpop.f32.mrf.mxu0
          %v833 = vadd.f32 %v720, %v832
          %834 = vmatmul.f32.gmra.mxu0 %v771
          %v835 = vpop.f32.mrf.mxu0
          %v836 = vadd.f32 %v723, %v835
          %837 = vmatmul.f32.gmra.mxu0 %v774
          %v838 = vpop.f32.mrf.mxu0
          %v839 = vadd.f32 %v726, %v838
          %840 = vmatmul.f32.gmra.mxu0 %v777
          %v841 = vpop.f32.mrf.mxu0
          %v842 = vadd.f32 %v729, %v841
          %843 = vmatmul.f32.gmra.mxu0 %v780
          %v844 = vpop.f32.mrf.mxu0
          %v845 = vadd.f32 %v732, %v844
          %846 = vmatmul.f32.gmra.mxu0 %v783
          %v847 = vpop.f32.mrf.mxu0
          %v848 = vadd.f32 %v735, %v847
          %849 = vmatmul.f32.gmra.mxu0 %v786
          %v850 = vpop.f32.mrf.mxu0
          %v851 = vadd.f32 %v738, %v850
          %852 = vmatmul.f32.gmra.mxu0 %v789
          %v853 = vpop.f32.mrf.mxu0
          %v854 = vadd.f32 %v741, %v853
          %855 = vmatmul.f32.gmra.mxu0 %v792
          %v856 = vpop.f32.mrf.mxu0
          %v857 = vadd.f32 %v744, %v856
          %858 = vmatmul.f32.gmra.mxu0 %v795
          %v859 = vpop.f32.mrf.mxu0
          %v860 = vadd.f32 %v747, %v859
          %861 = vmatmul.f32.gmra.mxu0 %v798
          %v862 = vpop.f32.mrf.mxu0
          %v863 = vadd.f32 %v750, %v862
          %864 = vmatmul.f32.gmra.mxu0 %v801
          %v865 = vpop.f32.mrf.mxu0
          %v866 = vadd.f32 %v753, %v865
          %867 = vmatmul.f32.gmra.mxu0 %v804
          %v868 = vpop.f32.mrf.mxu0
          %v869 = vadd.f32 %v756, %v868
          %870 = vdwg.mxu0
          %v871 = vld [vmem:[%s5] sm:$0x1]
          %v873 = vperm.slane %v871, 0
          %v875 = vadd.f32 %v824, %v873
          %v876 = vadd.f32 %v827, %v873
          %v877 = vadd.f32 %v830, %v873
          %v878 = vadd.f32 %v833, %v873
          %v879 = vadd.f32 %v836, %v873
          %v880 = vadd.f32 %v839, %v873
          %v881 = vadd.f32 %v842, %v873
          %v882 = vadd.f32 %v845, %v873
          %v883 = vadd.f32 %v848, %v873
          %v884 = vadd.f32 %v851, %v873
          %v885 = vadd.f32 %v854, %v873
          %v886 = vadd.f32 %v857, %v873
          %v887 = vadd.f32 %v860, %v873
          %v888 = vadd.f32 %v863, %v873
          %v889 = vadd.f32 %v866, %v873
          %v890 = vadd.f32 %v869, %v873
          %v891 = vmax.f32 %v875, 0.0
          %v892 = vmax.f32 %v876, 0.0
          %v893 = vmax.f32 %v877, 0.0
          %v894 = vmax.f32 %v878, 0.0
          %v895 = vmax.f32 %v879, 0.0
          %v896 = vmax.f32 %v880, 0.0
          %v897 = vmax.f32 %v881, 0.0
          %v898 = vmax.f32 %v882, 0.0
          %v899 = vmax.f32 %v883, 0.0
          %v900 = vmax.f32 %v884, 0.0
          %v901 = vmax.f32 %v885, 0.0
          %v902 = vmax.f32 %v886, 0.0
          %v903 = vmax.f32 %v887, 0.0
          %v904 = vmax.f32 %v888, 0.0
          %v905 = vmax.f32 %v889, 0.0
          %v906 = vmax.f32 %v890, 0.0
          %907 = vst.msk [vmem:[%s416] sm:$0xff] %vm584, %v891
          %908 = vst.msk [vmem:[%s416 + $0x8] sm:$0xff] %vm584, %v892
          %909 = vst.msk [vmem:[%s416 + $0x10] sm:$0xff] %vm584, %v893
          %910 = vst.msk [vmem:[%s416 + $0x18] sm:$0xff] %vm584, %v894
          %911 = vst.msk [vmem:[%s416 + $0x20] sm:$0xff] %vm584, %v895
          %912 = vst.msk [vmem:[%s416 + $0x28] sm:$0xff] %vm584, %v896
          %913 = vst.msk [vmem:[%s416 + $0x30] sm:$0xff] %vm584, %v897
          %914 = vst.msk [vmem:[%s416 + $0x38] sm:$0xff] %vm584, %v898
          %915 = vst.msk [vmem:[%s416 + $0x40] sm:$0xff] %vm584, %v899
          %916 = vst.msk [vmem:[%s416 + $0x48] sm:$0xff] %vm584, %v900
          %917 = vst.msk [vmem:[%s416 + $0x50] sm:$0xff] %vm584, %v901
          %918 = vst.msk [vmem:[%s416 + $0x58] sm:$0xff] %vm584, %v902
          %919 = vst.msk [vmem:[%s416 + $0x60] sm:$0xff] %vm584, %v903
          %920 = vst.msk [vmem:[%s416 + $0x68] sm:$0xff] %vm584, %v904
          %921 = vst.msk [vmem:[%s416 + $0x70] sm:$0xff] %vm584, %v905
          %922 = vst.msk [vmem:[%s416 + $0x78] sm:$0xff] %vm584, %v906
        $region93: #{_forward_impl.2} parent=80 // pred_fallthru
          _
        %s923 = smul.u32 16, %s21
        %p924 = scmp.lt.s32.totalorder %s923, 31
        %s925 = scalar_select %p924, %s923, 31
        %s926 = smul.addr %s925, 8
        %s927 = scalar_lea.vmem %s6, %s926
        // Predicated region
        $region94: #{_forward_impl.2} parent=80 // pred_check
          %p928 = pneg %p190
        $region95: #{_forward_impl.2} parent=80 // pred_check_branch
          %930 = sbr.rel (%p928) target = $region97
        $region96: #{_forward_impl.2} parent=80 // pred_region
          %s931 = smul.u32 16, %s21
        $region97: #{_forward_impl.2} parent=80 // pred_fallthru
          _
      $region81: #{_forward_impl.2} parent=5 // pred_fallthru
        _
      %p932 = scmp.le.s32.totalorder 2, %s12
      // Predicated region
      $region98: #{_forward_impl.2} parent=5 // pred_check
        %p933 = pneg %p932
      $region99: #{_forward_impl.2} parent=5 // pred_check_branch
        %935 = sbr.rel (%p933) target = $region101
      $region100: #{_forward_impl.2} parent=5 // pred_region
        %s936 = ssub.s32 %s12, 2
        // Predicated region
        $region102: #{_forward_impl.2} parent=100 // pred_check
          %p937 = pneg %p196
        $region103: #{_forward_impl.2} parent=100 // pred_check_branch
          %939 = sbr.rel (%p937) target = $region105
        $region104: #{_forward_impl.2} parent=100 // pred_region
          %s940 = smul.u32 16, %s23
          %p941 = scmp.lt.s32.totalorder %s940, 31
          %s942 = scalar_select %p941, %s940, 31
          %s943 = smul.addr %s942, 8
          %s944 = scalar_lea.vmem %s6, %s943
        $region105: #{_forward_impl.2} parent=100 // pred_fallthru
          _
      $region101: #{_forward_impl.2} parent=5 // pred_fallthru
        _
    $region6: #{_forward_impl.2} parent=1 // loop_footer
      %s16 = sadd.s32 1, %s12
    $region7: #{_forward_impl.2} parent=1 // loop_footer_branch
      %11 = sbr.rel target = $region3
    $region8: #{_forward_impl.2} parent=1 // loop_exit
      _

</llo_original>
